<compile_context>
chip_gen: v6e
topology: v6e:2x2x1
jax: 0.10.0
libtpu: 0.0.40
codegen_flags: <defaults>
</compile_context>

<pallas_src>
import math
import numpy as np
import jax
import jax.numpy as jnp
from jax import lax
from jax.experimental import pallas as pl
from jax.experimental.pallas import tpu as pltpu


def _make_kernel(seq_len, res_channels):
    T = seq_len
    C = res_channels
    inv_sqrt2 = np.float32(1.0 / math.sqrt(2.0))

    def kernel(x_ref, cond_ref, diff_ref, spk_ref,
               wdiff_ref, wspk_ref, wcond_ref, bcond_ref,
               wconv_ref, bconv_ref, wout_ref, bout_ref,
               out_ref):
        f32 = jnp.float32
        x = x_ref[0].astype(f32)        # [T, C]
        cond = cond_ref[0].astype(f32)  # [T, E]
        diff = diff_ref[0].astype(f32)  # [1, C]
        spk = spk_ref[0].astype(f32)    # [1, E]

        # diffusion / speaker / conditioner projections (all 1x1 -> matmuls)
        diff_proj = jnp.dot(diff, wdiff_ref[...], preferred_element_type=f32)  # [1, C]
        spk_proj = jnp.dot(spk, wspk_ref[...], preferred_element_type=f32)     # [1, C]
        cond_proj = (jnp.dot(cond, wcond_ref[...], preferred_element_type=f32)
                     + bcond_ref[...])                                          # [T, C]

        residual = x + diff_proj                       # broadcast over T -> [T, C]
        z = residual + cond_proj + spk_proj            # [T, C]

        # Conv1d(kernel_size=3, padding=1) along T as three shifted matmuls.
        # z[t-1]: roll down one sublane, zero row 0; z[t+1]: roll up, zero last row.
        row = lax.broadcasted_iota(jnp.int32, (T, 1), 0)
        zm1 = jnp.where(row > 0, pltpu.roll(z, shift=1, axis=0), f32(0.0))
        zp1 = jnp.where(row < T - 1, pltpu.roll(z, shift=T - 1, axis=0), f32(0.0))
        y = (jnp.dot(zm1, wconv_ref[0], preferred_element_type=f32)
             + jnp.dot(z, wconv_ref[1], preferred_element_type=f32)
             + jnp.dot(zp1, wconv_ref[2], preferred_element_type=f32)
             + bconv_ref[...])                          # [T, 2C]

        gate = y[:, :C]
        filt = y[:, C:]
        act = jax.nn.sigmoid(gate) * jnp.tanh(filt)     # [T, C]

        out = (jnp.dot(act, wout_ref[...], preferred_element_type=f32)
               + bout_ref[...])                         # [T, 2C]

        # first half -> (x_chunk + residual)/sqrt(2), second half -> skip
        out_ref[0, :, 0:C] = ((out[:, :C] + residual) * inv_sqrt2).astype(out_ref.dtype)
        out_ref[0, :, C:2 * C] = out[:, C:].astype(out_ref.dtype)

    return kernel


def residual_block_forward(x, conditioner, diffusion_step, speaker_emb, params):
    """Pallas forward for ResidualBlock (multi_speaker=True).

    x: [B, C, T], conditioner: [B, E, T], diffusion_step: [B, C], speaker_emb: [B, E].
    Returns (x_out, skip), each [B, C, T] float32 (same semantics as the PyTorch module).
    """
    # TODO(synk): multi_speaker=False path (drop the speaker projection term) not wired up.
    B, C, T = x.shape
    E = conditioner.shape[1]
    C2 = 2 * C

    # Channel-last presentation: channels on lanes, time on sublanes.
    x_t = jnp.transpose(x, (0, 2, 1)).astype(jnp.float32)               # [B, T, C]
    cond_t = jnp.transpose(conditioner, (0, 2, 1)).astype(jnp.float32)  # [B, T, E]
    diff3 = diffusion_step.astype(jnp.float32).reshape(B, 1, C)
    spk3 = speaker_emb.astype(jnp.float32).reshape(B, 1, E)

    # Weight layouts so every projection is (rows, K) @ (K, C_out).
    wdiff_t = jnp.asarray(params["w_diff"], jnp.float32).T               # [C, C]
    wspk_t = jnp.asarray(params["w_spk"], jnp.float32).T                 # [E, C]
    wcond_t = jnp.asarray(params["w_cond"], jnp.float32).T               # [E, C]
    bcond = jnp.asarray(params["b_cond"], jnp.float32).reshape(1, C)
    wconv_t = jnp.transpose(jnp.asarray(params["w_conv"], jnp.float32), (2, 1, 0))  # [3, C, 2C]
    bconv = jnp.asarray(params["b_conv"], jnp.float32).reshape(1, C2)
    wout_t = jnp.asarray(params["w_out"], jnp.float32).T                 # [C, 2C]
    bout = jnp.asarray(params["b_out"], jnp.float32).reshape(1, C2)

    kernel = _make_kernel(T, C)
    out = pl.pallas_call(
        kernel,
        out_shape=jax.ShapeDtypeStruct((B, T, C2), jnp.float32),
        grid_spec=pltpu.PrefetchScalarGridSpec(
            num_scalar_prefetch=0,
            grid=(B,),
            in_specs=[
                pl.BlockSpec((1, T, C), lambda b: (b, 0, 0)),     # x (channel-last)
                pl.BlockSpec((1, T, E), lambda b: (b, 0, 0)),     # conditioner
                pl.BlockSpec((1, 1, C), lambda b: (b, 0, 0)),     # diffusion_step
                pl.BlockSpec((1, 1, E), lambda b: (b, 0, 0)),     # speaker_emb
                pl.BlockSpec((C, C), lambda b: (0, 0)),           # w_diff^T
                pl.BlockSpec((E, C), lambda b: (0, 0)),           # w_spk^T
                pl.BlockSpec((E, C), lambda b: (0, 0)),           # w_cond^T
                pl.BlockSpec((1, C), lambda b: (0, 0)),           # b_cond
                pl.BlockSpec((3, C, C2), lambda b: (0, 0, 0)),    # conv k=3 weights
                pl.BlockSpec((1, C2), lambda b: (0, 0)),          # b_conv
                pl.BlockSpec((C, C2), lambda b: (0, 0)),          # w_out^T
                pl.BlockSpec((1, C2), lambda b: (0, 0)),          # b_out
            ],
            out_specs=pl.BlockSpec((1, T, C2), lambda b: (b, 0, 0)),
        ),
        compiler_params=pltpu.CompilerParams(dimension_semantics=("parallel",)),
    )(x_t, cond_t, diff3, spk3,
      wdiff_t, wspk_t, wcond_t, bcond, wconv_t, bconv, wout_t, bout)

    x_out = jnp.transpose(out[:, :, :C], (0, 2, 1))   # [B, C, T]
    skip = jnp.transpose(out[:, :, C:], (0, 2, 1))    # [B, C, T]
    return x_out, skip


def _reference(x, cond, diff, spk, p):
    """Pure numpy reimplementation of ResidualBlock.forward (multi_speaker=True)."""
    x = np.asarray(x, np.float32)
    cond = np.asarray(cond, np.float32)
    diff = np.asarray(diff, np.float32)
    spk = np.asarray(spk, np.float32)
    B, C, T = x.shape
    d = (diff @ p["w_diff"].T)[:, :, None]                                       # [B, C, 1]
    c = np.einsum("oe,bet->bot", p["w_cond"], cond) + p["b_cond"][None, :, None]  # [B, C, T]
    s = (spk @ p["w_spk"].T)[:, :, None]                                          # [B, C, 1]
    residual = x + d
    z = residual + c + s
    zp = np.pad(z, ((0, 0), (0, 0), (1, 1)))
    y = (np.einsum("oi,bit->bot", p["w_conv"][:, :, 0], zp[:, :, 0:T])
         + np.einsum("oi,bit->bot", p["w_conv"][:, :, 1], zp[:, :, 1:T + 1])
         + np.einsum("oi,bit->bot", p["w_conv"][:, :, 2], zp[:, :, 2:T + 2])
         + p["b_conv"][None, :, None])
    gate, filt = y[:, :C], y[:, C:]
    act = 1.0 / (1.0 + np.exp(-gate)) * np.tanh(filt)
    o = np.einsum("oi,bit->bot", p["w_out"], act) + p["b_out"][None, :, None]
    x_out = (o[:, :C] + residual) / math.sqrt(2.0)
    skip = o[:, C:]
    return x_out, skip


if __name__ == "__main__":
    B, C, E, T = 2, 64, 32, 16   # batch, residual_channels, d_encoder, time steps

    key = jax.random.PRNGKey(0)
    ks = jax.random.split(key, 12)
    x = jax.random.normal(ks[0], (B, C, T), jnp.float32)
    cond = jax.random.normal(ks[1], (B, E, T), jnp.float32)
    diff = jax.random.normal(ks[2], (B, C), jnp.float32)
    spk = jax.random.normal(ks[3], (B, E), jnp.float32)

    scale = 0.1
    params = {
        "w_diff": scale * jax.random.normal(ks[4], (C, C), jnp.float32),
        "w_spk": scale * jax.random.normal(ks[5], (C, E), jnp.float32),
        "w_cond": scale * jax.random.normal(ks[6], (C, E), jnp.float32),
        "b_cond": scale * jax.random.normal(ks[7], (C,), jnp.float32),
        "w_conv": scale * jax.random.normal(ks[8], (2 * C, C, 3), jnp.float32),
        "b_conv": scale * jax.random.normal(ks[9], (2 * C,), jnp.float32),
        "w_out": scale * jax.random.normal(ks[10], (2 * C, C), jnp.float32),
        "b_out": scale * jax.random.normal(ks[11], (2 * C,), jnp.float32),
    }

    x_out, skip = residual_block_forward(x, cond, diff, spk, params)
    x_out, skip = jax.block_until_ready((x_out, skip))

    np_params = {k: np.asarray(v) for k, v in params.items()}
    ref_x, ref_skip = _reference(x, cond, diff, spk, np_params)

    assert x_out.shape == (B, C, T) and skip.shape == (B, C, T)
    err_x = float(np.max(np.abs(np.asarray(x_out) - ref_x)))
    err_s = float(np.max(np.abs(np.asarray(skip) - ref_skip)))
    assert err_x < 2e-3 and err_s < 2e-3, (err_x, err_s)

    print("KERNEL_OK")
</pallas_src>

<mosaic_0001>
module attributes {stable_mosaic.version = 11 : i64} {
  func.func @kernel(%arg0: i32, %arg1: memref<1x16x64xf32, #tpu.memory_space<vmem>>, %arg2: memref<1x16x32xf32, #tpu.memory_space<vmem>>, %arg3: memref<1x1x64xf32, #tpu.memory_space<vmem>>, %arg4: memref<1x1x32xf32, #tpu.memory_space<vmem>>, %arg5: memref<64x64xf32, #tpu.memory_space<vmem>>, %arg6: memref<32x64xf32, #tpu.memory_space<vmem>>, %arg7: memref<32x64xf32, #tpu.memory_space<vmem>>, %arg8: memref<1x64xf32, #tpu.memory_space<vmem>>, %arg9: memref<3x64x128xf32, #tpu.memory_space<vmem>>, %arg10: memref<1x128xf32, #tpu.memory_space<vmem>>, %arg11: memref<64x128xf32, #tpu.memory_space<vmem>>, %arg12: memref<1x128xf32, #tpu.memory_space<vmem>>, %arg13: memref<1x16x128xf32, #tpu.memory_space<vmem>>) attributes {dimension_semantics = [#tpu.dimension_semantics<parallel>], iteration_bounds = array<i64: 2>, scalar_prefetch = 0 : i64, scratch_operands = 0 : i64, tpu.core_type = #tpu.core_type<tc>, window_params = [{transform_indices = @transform_0, window_bounds = array<i64: 1, 16, 64>}, {transform_indices = @transform_1, window_bounds = array<i64: 1, 16, 32>}, {transform_indices = @transform_2, window_bounds = array<i64: 1, 1, 64>}, {transform_indices = @transform_3, window_bounds = array<i64: 1, 1, 32>}, {pipeline_mode = #tpu.pipeline_mode<synchronous>, transform_indices = @transform_4, window_bounds = array<i64: 64, 64>}, {pipeline_mode = #tpu.pipeline_mode<synchronous>, transform_indices = @transform_5, window_bounds = array<i64: 32, 64>}, {pipeline_mode = #tpu.pipeline_mode<synchronous>, transform_indices = @transform_6, window_bounds = array<i64: 32, 64>}, {pipeline_mode = #tpu.pipeline_mode<synchronous>, transform_indices = @transform_7, window_bounds = array<i64: 1, 64>}, {pipeline_mode = #tpu.pipeline_mode<synchronous>, transform_indices = @transform_8, window_bounds = array<i64: 3, 64, 128>}, {pipeline_mode = #tpu.pipeline_mode<synchronous>, transform_indices = @transform_9, window_bounds = array<i64: 1, 128>}, {pipeline_mode = #tpu.pipeline_mode<synchronous>, transform_indices = @transform_10, window_bounds = array<i64: 64, 128>}, {pipeline_mode = #tpu.pipeline_mode<synchronous>, transform_indices = @transform_11, window_bounds = array<i64: 1, 128>}, {transform_indices = @transform_12, window_bounds = array<i64: 1, 16, 128>}]} {
    %c0 = arith.constant 0 : index
    %c0_0 = arith.constant 0 : index
    %c0_1 = arith.constant 0 : index
    %0 = vector.load %arg1[%c0, %c0_0, %c0_1] : memref<1x16x64xf32, #tpu.memory_space<vmem>>, vector<1x16x64xf32>
    %1 = vector.shape_cast %0 : vector<1x16x64xf32> to vector<16x64xf32>
    %c0_2 = arith.constant 0 : index
    %c0_3 = arith.constant 0 : index
    %c0_4 = arith.constant 0 : index
    %2 = vector.load %arg2[%c0_2, %c0_3, %c0_4] : memref<1x16x32xf32, #tpu.memory_space<vmem>>, vector<1x16x32xf32>
    %3 = vector.shape_cast %2 : vector<1x16x32xf32> to vector<16x32xf32>
    %c0_5 = arith.constant 0 : index
    %c0_6 = arith.constant 0 : index
    %c0_7 = arith.constant 0 : index
    %4 = vector.load %arg3[%c0_5, %c0_6, %c0_7] : memref<1x1x64xf32, #tpu.memory_space<vmem>>, vector<1x1x64xf32>
    %5 = vector.shape_cast %4 : vector<1x1x64xf32> to vector<1x64xf32>
    %c0_8 = arith.constant 0 : index
    %c0_9 = arith.constant 0 : index
    %c0_10 = arith.constant 0 : index
    %6 = vector.load %arg4[%c0_8, %c0_9, %c0_10] : memref<1x1x32xf32, #tpu.memory_space<vmem>>, vector<1x1x32xf32>
    %7 = vector.shape_cast %6 : vector<1x1x32xf32> to vector<1x32xf32>
    %c0_11 = arith.constant 0 : index
    %c0_12 = arith.constant 0 : index
    %8 = vector.load %arg5[%c0_11, %c0_12] : memref<64x64xf32, #tpu.memory_space<vmem>>, vector<64x64xf32>
    %cst = arith.constant dense<0.000000e+00> : vector<1x64xf32>
    %9 = tpu.matmul %5, %8, %cst {dimension_numbers = #tpu.dot_dimension_numbers<[1], [0], [0], [1], [0, 0, 1, 1], [], []>} : vector<1x64xf32>, vector<64x64xf32>, vector<1x64xf32> -> vector<1x64xf32>
    %c0_13 = arith.constant 0 : index
    %c0_14 = arith.constant 0 : index
    %10 = vector.load %arg6[%c0_13, %c0_14] : memref<32x64xf32, #tpu.memory_space<vmem>>, vector<32x64xf32>
    %cst_15 = arith.constant dense<0.000000e+00> : vector<1x64xf32>
    %11 = tpu.matmul %7, %10, %cst_15 {dimension_numbers = #tpu.dot_dimension_numbers<[1], [0], [0], [1], [0, 0, 1, 1], [], []>} : vector<1x32xf32>, vector<32x64xf32>, vector<1x64xf32> -> vector<1x64xf32>
    %c0_16 = arith.constant 0 : index
    %c0_17 = arith.constant 0 : index
    %12 = vector.load %arg7[%c0_16, %c0_17] : memref<32x64xf32, #tpu.memory_space<vmem>>, vector<32x64xf32>
    %cst_18 = arith.constant dense<0.000000e+00> : vector<16x64xf32>
    %13 = tpu.matmul %3, %12, %cst_18 {dimension_numbers = #tpu.dot_dimension_numbers<[1], [0], [0], [1], [0, 0, 1, 1], [], []>} : vector<16x32xf32>, vector<32x64xf32>, vector<16x64xf32> -> vector<16x64xf32>
    %c0_19 = arith.constant 0 : index
    %c0_20 = arith.constant 0 : index
    %14 = vector.load %arg8[%c0_19, %c0_20] : memref<1x64xf32, #tpu.memory_space<vmem>>, vector<1x64xf32>
    %15 = vector.broadcast %14 : vector<1x64xf32> to vector<16x64xf32>
    %16 = arith.addf %13, %15 : vector<16x64xf32>
    %17 = vector.broadcast %9 : vector<1x64xf32> to vector<16x64xf32>
    %18 = arith.addf %1, %17 : vector<16x64xf32>
    %19 = arith.addf %18, %16 : vector<16x64xf32>
    %20 = vector.broadcast %11 : vector<1x64xf32> to vector<16x64xf32>
    %21 = arith.addf %19, %20 : vector<16x64xf32>
    %22 = tpu.iota {dimensions = array<i32: 0>} : vector<16x1xi32>
    %c0_i32 = arith.constant 0 : i32
    %23 = vector.broadcast %c0_i32 : i32 to vector<16x1xi32>
    %24 = arith.cmpi sgt, %22, %23 : vector<16x1xi32>
    %c1_i32 = arith.constant 1 : i32
    %25 = tpu.dynamic_rotate %21 by %c1_i32 dim 0 : vector<16x64xf32>, i32 -> vector<16x64xf32>
    %cst_21 = arith.constant 0.000000e+00 : f32
    %26 = vector.shape_cast %24 : vector<16x1xi1> to vector<16x1xi1>
    %27 = vector.broadcast %26 : vector<16x1xi1> to vector<16x64xi1>
    %28 = vector.broadcast %cst_21 : f32 to vector<16x64xf32>
    %29 = arith.select %27, %25, %28 : vector<16x64xi1>, vector<16x64xf32>
    %c15_i32 = arith.constant 15 : i32
    %30 = vector.broadcast %c15_i32 : i32 to vector<16x1xi32>
    %31 = arith.cmpi slt, %22, %30 : vector<16x1xi32>
    %c15_i32_22 = arith.constant 15 : i32
    %32 = tpu.dynamic_rotate %21 by %c15_i32_22 dim 0 : vector<16x64xf32>, i32 -> vector<16x64xf32>
    %cst_23 = arith.constant 0.000000e+00 : f32
    %33 = vector.shape_cast %31 : vector<16x1xi1> to vector<16x1xi1>
    %34 = vector.broadcast %33 : vector<16x1xi1> to vector<16x64xi1>
    %35 = vector.broadcast %cst_23 : f32 to vector<16x64xf32>
    %36 = arith.select %34, %32, %35 : vector<16x64xi1>, vector<16x64xf32>
    %c0_24 = arith.constant 0 : index
    %c0_25 = arith.constant 0 : index
    %c0_26 = arith.constant 0 : index
    %37 = vector.load %arg9[%c0_24, %c0_25, %c0_26] : memref<3x64x128xf32, #tpu.memory_space<vmem>>, vector<1x64x128xf32>
    %38 = vector.shape_cast %37 : vector<1x64x128xf32> to vector<64x128xf32>
    %cst_27 = arith.constant dense<0.000000e+00> : vector<16x128xf32>
    %39 = tpu.matmul %29, %38, %cst_27 {dimension_numbers = #tpu.dot_dimension_numbers<[1], [0], [0], [1], [0, 0, 1, 1], [], []>} : vector<16x64xf32>, vector<64x128xf32>, vector<16x128xf32> -> vector<16x128xf32>
    %c1 = arith.constant 1 : index
    %c0_28 = arith.constant 0 : index
    %c0_29 = arith.constant 0 : index
    %40 = vector.load %arg9[%c1, %c0_28, %c0_29] : memref<3x64x128xf32, #tpu.memory_space<vmem>>, vector<1x64x128xf32>
    %41 = vector.shape_cast %40 : vector<1x64x128xf32> to vector<64x128xf32>
    %cst_30 = arith.constant dense<0.000000e+00> : vector<16x128xf32>
    %42 = tpu.matmul %21, %41, %cst_30 {dimension_numbers = #tpu.dot_dimension_numbers<[1], [0], [0], [1], [0, 0, 1, 1], [], []>} : vector<16x64xf32>, vector<64x128xf32>, vector<16x128xf32> -> vector<16x128xf32>
    %43 = arith.addf %39, %42 : vector<16x128xf32>
    %c2 = arith.constant 2 : index
    %c0_31 = arith.constant 0 : index
    %c0_32 = arith.constant 0 : index
    %44 = vector.load %arg9[%c2, %c0_31, %c0_32] : memref<3x64x128xf32, #tpu.memory_space<vmem>>, vector<1x64x128xf32>
    %45 = vector.shape_cast %44 : vector<1x64x128xf32> to vector<64x128xf32>
    %cst_33 = arith.constant dense<0.000000e+00> : vector<16x128xf32>
    %46 = tpu.matmul %36, %45, %cst_33 {dimension_numbers = #tpu.dot_dimension_numbers<[1], [0], [0], [1], [0, 0, 1, 1], [], []>} : vector<16x64xf32>, vector<64x128xf32>, vector<16x128xf32> -> vector<16x128xf32>
    %47 = arith.addf %43, %46 : vector<16x128xf32>
    %c0_34 = arith.constant 0 : index
    %c0_35 = arith.constant 0 : index
    %48 = vector.load %arg10[%c0_34, %c0_35] : memref<1x128xf32, #tpu.memory_space<vmem>>, vector<1x128xf32>
    %49 = vector.broadcast %48 : vector<1x128xf32> to vector<16x128xf32>
    %50 = arith.addf %47, %49 : vector<16x128xf32>
    %51 = vector.extract_strided_slice %50 {offsets = [0, 0], sizes = [16, 64], strides = [1, 1]} : vector<16x128xf32> to vector<16x64xf32>
    %52 = vector.extract_strided_slice %50 {offsets = [0, 64], sizes = [16, 64], strides = [1, 1]} : vector<16x128xf32> to vector<16x64xf32>
    %53 = arith.negf %51 : vector<16x64xf32>
    %54 = math.exp %53 : vector<16x64xf32>
    %cst_36 = arith.constant 1.000000e+00 : f32
    %55 = vector.broadcast %cst_36 : f32 to vector<16x64xf32>
    %56 = arith.addf %55, %54 : vector<16x64xf32>
    %57 = arith.divf %55, %56 : vector<16x64xf32>
    %58 = math.tanh %52 : vector<16x64xf32>
    %59 = arith.mulf %57, %58 : vector<16x64xf32>
    %c0_37 = arith.constant 0 : index
    %c0_38 = arith.constant 0 : index
    %60 = vector.load %arg11[%c0_37, %c0_38] : memref<64x128xf32, #tpu.memory_space<vmem>>, vector<64x128xf32>
    %cst_39 = arith.constant dense<0.000000e+00> : vector<16x128xf32>
    %61 = tpu.matmul %59, %60, %cst_39 {dimension_numbers = #tpu.dot_dimension_numbers<[1], [0], [0], [1], [0, 0, 1, 1], [], []>} : vector<16x64xf32>, vector<64x128xf32>, vector<16x128xf32> -> vector<16x128xf32>
    %c0_40 = arith.constant 0 : index
    %c0_41 = arith.constant 0 : index
    %62 = vector.load %arg12[%c0_40, %c0_41] : memref<1x128xf32, #tpu.memory_space<vmem>>, vector<1x128xf32>
    %63 = vector.broadcast %62 : vector<1x128xf32> to vector<16x128xf32>
    %64 = arith.addf %61, %63 : vector<16x128xf32>
    %65 = vector.extract_strided_slice %64 {offsets = [0, 0], sizes = [16, 64], strides = [1, 1]} : vector<16x128xf32> to vector<16x64xf32>
    %66 = arith.addf %65, %18 : vector<16x64xf32>
    %cst_42 = arith.constant 0.707106769 : f32
    %67 = vector.broadcast %cst_42 : f32 to vector<16x64xf32>
    %68 = arith.mulf %66, %67 : vector<16x64xf32>
    %c0_43 = arith.constant 0 : index
    %c0_44 = arith.constant 0 : index
    %c0_45 = arith.constant 0 : index
    %69 = vector.load %arg13[%c0_43, %c0_44, %c0_45] : memref<1x16x128xf32, #tpu.memory_space<vmem>>, vector<1x16x64xf32>
    %70 = vector.shape_cast %69 : vector<1x16x64xf32> to vector<16x64xf32>
    %71 = vector.shape_cast %68 : vector<16x64xf32> to vector<1x16x64xf32>
    tpu.vector_store %arg13[%c0_43, %c0_44, %c0_45], %71 {strides = array<i32>} : memref<1x16x128xf32, #tpu.memory_space<vmem>>, vector<1x16x64xf32>,
    %72 = vector.extract_strided_slice %64 {offsets = [0, 64], sizes = [16, 64], strides = [1, 1]} : vector<16x128xf32> to vector<16x64xf32>
    %c0_46 = arith.constant 0 : index
    %c0_47 = arith.constant 0 : index
    %c64 = arith.constant 64 : index
    %73 = vector.load %arg13[%c0_46, %c0_47, %c64] : memref<1x16x128xf32, #tpu.memory_space<vmem>>, vector<1x16x64xf32>
    %74 = vector.shape_cast %73 : vector<1x16x64xf32> to vector<16x64xf32>
    %75 = vector.shape_cast %72 : vector<16x64xf32> to vector<1x16x64xf32>
    tpu.vector_store %arg13[%c0_46, %c0_47, %c64], %75 {strides = array<i32>} : memref<1x16x128xf32, #tpu.memory_space<vmem>>, vector<1x16x64xf32>,
    return
  }
  func.func @transform_0(%arg0: i32) -> (i32, i32, i32) {
    %c0_i32 = arith.constant 0 : i32
    %c0_i32_0 = arith.constant 0 : i32
    %c0_i32_1 = arith.constant 0 : i32
    return %arg0, %c0_i32, %c0_i32_0 : i32, i32, i32
  }
  func.func @transform_1(%arg0: i32) -> (i32, i32, i32) {
    %c0_i32 = arith.constant 0 : i32
    %c0_i32_0 = arith.constant 0 : i32
    %c0_i32_1 = arith.constant 0 : i32
    return %arg0, %c0_i32, %c0_i32_0 : i32, i32, i32
  }
  func.func @transform_2(%arg0: i32) -> (i32, i32, i32) {
    %c0_i32 = arith.constant 0 : i32
    %c0_i32_0 = arith.constant 0 : i32
    %c0_i32_1 = arith.constant 0 : i32
    return %arg0, %c0_i32, %c0_i32_0 : i32, i32, i32
  }
  func.func @transform_3(%arg0: i32) -> (i32, i32, i32) {
    %c0_i32 = arith.constant 0 : i32
    %c0_i32_0 = arith.constant 0 : i32
    %c0_i32_1 = arith.constant 0 : i32
    return %arg0, %c0_i32, %c0_i32_0 : i32, i32, i32
  }
  func.func @transform_4(%arg0: i32) -> (i32, i32) {
    %c0_i32 = arith.constant 0 : i32
    %c0_i32_0 = arith.constant 0 : i32
    %c0_i32_1 = arith.constant 0 : i32
    return %c0_i32, %c0_i32_0 : i32, i32
  }
  func.func @transform_5(%arg0: i32) -> (i32, i32) {
    %c0_i32 = arith.constant 0 : i32
    %c0_i32_0 = arith.constant 0 : i32
    %c0_i32_1 = arith.constant 0 : i32
    return %c0_i32, %c0_i32_0 : i32, i32
  }
  func.func @transform_6(%arg0: i32) -> (i32, i32) {
    %c0_i32 = arith.constant 0 : i32
    %c0_i32_0 = arith.constant 0 : i32
    %c0_i32_1 = arith.constant 0 : i32
    return %c0_i32, %c0_i32_0 : i32, i32
  }
  func.func @transform_7(%arg0: i32) -> (i32, i32) {
    %c0_i32 = arith.constant 0 : i32
    %c0_i32_0 = arith.constant 0 : i32
    %c0_i32_1 = arith.constant 0 : i32
    return %c0_i32, %c0_i32_0 : i32, i32
  }
  func.func @transform_8(%arg0: i32) -> (i32, i32, i32) {
    %c0_i32 = arith.constant 0 : i32
    %c0_i32_0 = arith.constant 0 : i32
    %c0_i32_1 = arith.constant 0 : i32
    %c0_i32_2 = arith.constant 0 : i32
    return %c0_i32, %c0_i32_0, %c0_i32_1 : i32, i32, i32
  }
  func.func @transform_9(%arg0: i32) -> (i32, i32) {
    %c0_i32 = arith.constant 0 : i32
    %c0_i32_0 = arith.constant 0 : i32
    %c0_i32_1 = arith.constant 0 : i32
    return %c0_i32, %c0_i32_0 : i32, i32
  }
  func.func @transform_10(%arg0: i32) -> (i32, i32) {
    %c0_i32 = arith.constant 0 : i32
    %c0_i32_0 = arith.constant 0 : i32
    %c0_i32_1 = arith.constant 0 : i32
    return %c0_i32, %c0_i32_0 : i32, i32
  }
  func.func @transform_11(%arg0: i32) -> (i32, i32) {
    %c0_i32 = arith.constant 0 : i32
    %c0_i32_0 = arith.constant 0 : i32
    %c0_i32_1 = arith.constant 0 : i32
    return %c0_i32, %c0_i32_0 : i32, i32
  }
  func.func @transform_12(%arg0: i32) -> (i32, i32, i32) {
    %c0_i32 = arith.constant 0 : i32
    %c0_i32_0 = arith.constant 0 : i32
    %c0_i32_1 = arith.constant 0 : i32
    return %arg0, %c0_i32, %c0_i32_0 : i32, i32, i32
  }
}

</mosaic_0001>

<llo_original>
// kernel: tpu_custom_call.1
$region0: #{tpu_custom_call.1}
  #allocation0 [shape = 'u32[]', space=smem, size = 0x4, offset = 0x4, fixed_abs, tag = 'smem constant byte address 0x4 - core index']
  #allocation1 [shape = 'u32[144,128]{1,0:T(1,128)}', space=vmem, size = 0x12000, scoped, tag = 'internal scratch']
  %s0 = inlined_call_operand.hbm [shape: f32[2,16,64], index: 0, kind: input, shape index: {}]
  %s1 = inlined_call_operand.hbm [shape: f32[2,16,32], index: 1, kind: input, shape index: {}]
  %s2 = inlined_call_operand.vmem [shape: f32[2,1,64], index: 2, kind: input, shape index: {}]
  %s3 = inlined_call_operand.vmem [shape: f32[2,1,32], index: 3, kind: input, shape index: {}]
  %s4 = inlined_call_operand.hbm [shape: f32[64,64], index: 4, kind: input, shape index: {}]
  %s5 = inlined_call_operand.hbm [shape: f32[32,64], index: 5, kind: input, shape index: {}]
  %s6 = inlined_call_operand.hbm [shape: f32[32,64], index: 6, kind: input, shape index: {}]
  %s7 = inlined_call_operand.vmem [shape: f32[1,64], index: 7, kind: input, shape index: {}]
  %s8 = inlined_call_operand.hbm [shape: f32[3,64,128], index: 8, kind: input, shape index: {}]
  %s9 = inlined_call_operand.vmem [shape: f32[1,128], index: 9, kind: input, shape index: {}]
  %s10 = inlined_call_operand.hbm [shape: f32[64,128], index: 10, kind: input, shape index: {}]
  %s11 = inlined_call_operand.vmem [shape: f32[1,128], index: 11, kind: input, shape index: {}]
  %s12 = inlined_call_operand.hbm [shape: f32[2,16,128], index: 12, kind: output, shape index: {}]
  %s13 = sld [smem:[#allocation0]]
  $region109: #{tpu_custom_call.1} parent=0
    _
  %s15 = ssub.s32 1, %s13
  %s16 = scalar_select 0, %s15, %s13
  $region1: #{tpu_custom_call.1} parent=0
    #allocation2 [shape = 'u8[16384]{0}', space=vmem, size = 0x4000, scoped, tag = 'input window, operand 0']
    #allocation3 [shape = 's32[2]{0}', space=sflag, size = 0x8, scoped, tag = 'scoped memory for tpu_custom_call.1']
    #allocation4 [shape = 's32[2]{0}', space=sflag, size = 0x8, scoped, tag = 'scoped memory for tpu_custom_call.1']
    #allocation5 [shape = 'u8[16384]{0}', space=vmem, size = 0x4000, scoped, tag = 'input window, operand 1']
    #allocation6 [shape = 's32[2]{0}', space=sflag, size = 0x8, scoped, tag = 'scoped memory for tpu_custom_call.1']
    #allocation7 [shape = 'u8[32768]{0}', space=vmem, size = 0x8000, scoped, tag = 'input window, operand 4, single buffered']
    #allocation8 [shape = 'u8[16384]{0}', space=vmem, size = 0x4000, scoped, tag = 'input window, operand 5, single buffered']
    #allocation9 [shape = 's32[1]{0}', space=sflag, size = 0x4, scoped, tag = 'scoped memory for tpu_custom_call.1']
    #allocation10 [shape = 'u8[16384]{0}', space=vmem, size = 0x4000, scoped, tag = 'input window, operand 6, single buffered']
    #allocation11 [shape = 'u8[98304]{0}', space=vmem, size = 0x18000, scoped, tag = 'input window, operand 8, single buffered']
    #allocation12 [shape = 's32[1]{0}', space=sflag, size = 0x4, scoped, tag = 'scoped memory for tpu_custom_call.1']
    #allocation13 [shape = 'u8[32768]{0}', space=vmem, size = 0x8000, scoped, tag = 'input window, operand 10, single buffered']
    #allocation14 [shape = 'u8[16384]{0}', space=vmem, size = 0x4000, scoped, tag = 'output window, operand 0']
    %17 = vsyncpa [#allocation3], 0
    %s18 = scalar_lea.sflag [#allocation3], 1
    %19 = vsyncpa %s18, 0
    %20 = vsyncpa [#allocation6], 0
    %s21 = scalar_lea.sflag [#allocation6], 1
    %22 = vsyncpa %s21, 0
    %23 = vsyncpa [#allocation9], 0
    %24 = vsyncpa [#allocation12], 0
    %25 = vsyncpa [#allocation4], 0
    %s26 = scalar_lea.sflag [#allocation4], 1
    %27 = vsyncpa %s26, 0
    loop: start=0, step=1, limit=4
    $region2: #{tpu_custom_call.1} parent=1 // loop_pre_header
      _
    $region3: #{tpu_custom_call.1} parent=1 // loop_header
      %s29 = sphi 0, %s33
      %p30 = scmp.ge.s32.totalorder %s29, 4
      %s39 = sphi 0, %s41
      %s42 = sphi 0, %s39
      %s43 = sphi 0, %s42
      %s59 = sphi 0, %s43
      %s65 = sphi 0, %s67
      %s68 = sphi 0, %s65
      %s69 = sphi 0, %s68
      %s85 = sphi 0, %s69
      %s91 = sphi 0, %s93
      %s94 = sphi 0, %s91
      %s95 = sphi 0, %s94
      %s111 = sphi 0, %s95
      %s117 = sphi 0, %s119
      %s120 = sphi 0, %s117
      %s121 = sphi 0, %s120
      %s137 = sphi 0, %s121
      %s141 = sphi 0, %s141
      %s143 = sphi 0, %s141
      %s144 = sphi 0, %s143
      %s158 = sphi 0, %s144
      %s162 = sphi 0, %s162
      %s164 = sphi 0, %s162
      %s165 = sphi 0, %s164
      %s179 = sphi 0, %s165
      %s183 = sphi 0, %s183
      %s185 = sphi 0, %s183
      %s186 = sphi 0, %s185
      %s200 = sphi 0, %s186
      %s204 = sphi 0, %s204
      %s206 = sphi 0, %s204
      %s207 = sphi 0, %s206
      %s221 = sphi 0, %s207
      %s225 = sphi 0, %s225
      %s227 = sphi 0, %s225
      %s228 = sphi 0, %s227
      %s242 = sphi 0, %s228
      %s246 = sphi 0, %s246
      %s248 = sphi 0, %s246
      %s249 = sphi 0, %s248
      %s263 = sphi 0, %s249
      %s267 = sphi 0, %s267
      %s269 = sphi 0, %s267
      %s270 = sphi 0, %s269
      %s284 = sphi 0, %s270
      %s288 = sphi 0, %s288
      %s290 = sphi 0, %s288
      %s291 = sphi 0, %s290
      %s305 = sphi 0, %s291
      %s311 = sphi 0, %s313
      %s314 = sphi 0, %s311
      %s315 = sphi 0, %s314
      %s331 = sphi 0, %s315
    $region4: #{tpu_custom_call.1} parent=1 // loop_header_branch
      %32 = sbr.rel (%p30) target = $region8
    $region5: #{tpu_custom_call.1} parent=1 // loop_body
      %s34 = ssub.s32 %s29, 1
      %s35 = ssub.s32 %s29, 2
      %s36 = sadd.s32 %s29, 1
      %s37 = ssub.s32 %s29, %s36
      %p38 = scmp.eq.s32.totalorder %s37, 0
      %s40 = sadd.s32 %s39, 1
      %s41 = scalar_select %p38, %s39, %s40
      %p44 = pneg %p38
      %p45 = scmp.eq.s32.totalorder %s29, 1
      %p46 = por %p44, %p45
      %p47 = scmp.ne.s32.totalorder %s39, %s42
      %p48 = scmp.eq.s32.totalorder %s29, 0
      %p49 = por %p47, %p48
      %p50 = scmp.ne.s32.totalorder %s39, %s42
      %p51 = scmp.eq.s32.totalorder %s34, 1
      %p52 = por %p50, %p51
      %p53 = scmp.ne.s32.totalorder %s42, %s43
      %p54 = scmp.eq.s32.totalorder %s34, 0
      %p55 = por %p53, %p54
      %p56 = scmp.ne.s32.totalorder %s42, %s43
      %p57 = scmp.eq.s32.totalorder %s35, 1
      %p58 = por %p56, %p57
      %p60 = scmp.ne.s32.totalorder %s43, %s59
      %p61 = scmp.eq.s32.totalorder %s35, 0
      %p62 = por %p60, %p61
      %s63 = ssub.s32 %s29, %s36
      %p64 = scmp.eq.s32.totalorder %s63, 0
      %s66 = sadd.s32 %s65, 1
      %s67 = scalar_select %p64, %s65, %s66
      %p70 = pneg %p64
      %p71 = scmp.eq.s32.totalorder %s29, 1
      %p72 = por %p70, %p71
      %p73 = scmp.ne.s32.totalorder %s65, %s68
      %p74 = scmp.eq.s32.totalorder %s29, 0
      %p75 = por %p73, %p74
      %p76 = scmp.ne.s32.totalorder %s65, %s68
      %p77 = scmp.eq.s32.totalorder %s34, 1
      %p78 = por %p76, %p77
      %p79 = scmp.ne.s32.totalorder %s68, %s69
      %p80 = scmp.eq.s32.totalorder %s34, 0
      %p81 = por %p79, %p80
      %p82 = scmp.ne.s32.totalorder %s68, %s69
      %p83 = scmp.eq.s32.totalorder %s35, 1
      %p84 = por %p82, %p83
      %p86 = scmp.ne.s32.totalorder %s69, %s85
      %p87 = scmp.eq.s32.totalorder %s35, 0
      %p88 = por %p86, %p87
      %s89 = ssub.s32 %s29, %s36
      %p90 = scmp.eq.s32.totalorder %s89, 0
      %s92 = sadd.s32 %s91, 1
      %s93 = scalar_select %p90, %s91, %s92
      %p96 = pneg %p90
      %p97 = scmp.eq.s32.totalorder %s29, 1
      %p98 = por %p96, %p97
      %p99 = scmp.ne.s32.totalorder %s91, %s94
      %p100 = scmp.eq.s32.totalorder %s29, 0
      %p101 = por %p99, %p100
      %p102 = scmp.ne.s32.totalorder %s91, %s94
      %p103 = scmp.eq.s32.totalorder %s34, 1
      %p104 = por %p102, %p103
      %p105 = scmp.ne.s32.totalorder %s94, %s95
      %p106 = scmp.eq.s32.totalorder %s34, 0
      %p107 = por %p105, %p106
      %p108 = scmp.ne.s32.totalorder %s94, %s95
      %p109 = scmp.eq.s32.totalorder %s35, 1
      %p110 = por %p108, %p109
      %p112 = scmp.ne.s32.totalorder %s95, %s111
      %p113 = scmp.eq.s32.totalorder %s35, 0
      %p114 = por %p112, %p113
      %s115 = ssub.s32 %s29, %s36
      %p116 = scmp.eq.s32.totalorder %s115, 0
      %s118 = sadd.s32 %s117, 1
      %s119 = scalar_select %p116, %s117, %s118
      %p122 = pneg %p116
      %p123 = scmp.eq.s32.totalorder %s29, 1
      %p124 = por %p122, %p123
      %p125 = scmp.ne.s32.totalorder %s117, %s120
      %p126 = scmp.eq.s32.totalorder %s29, 0
      %p127 = por %p125, %p126
      %p128 = scmp.ne.s32.totalorder %s117, %s120
      %p129 = scmp.eq.s32.totalorder %s34, 1
      %p130 = por %p128, %p129
      %p131 = scmp.ne.s32.totalorder %s120, %s121
      %p132 = scmp.eq.s32.totalorder %s34, 0
      %p133 = por %p131, %p132
      %p134 = scmp.ne.s32.totalorder %s120, %s121
      %p135 = scmp.eq.s32.totalorder %s35, 1
      %p136 = por %p134, %p135
      %p138 = scmp.ne.s32.totalorder %s121, %s137
      %p139 = scmp.eq.s32.totalorder %s35, 0
      %p140 = por %p138, %p139
      %s142 = sadd.s32 %s141, 1
      %p145 = scmp.eq.s32.totalorder %s29, 1
      %p146 = scmp.ne.s32.totalorder %s141, %s143
      %p147 = scmp.eq.s32.totalorder %s29, 0
      %p148 = por %p146, %p147
      %p149 = scmp.ne.s32.totalorder %s141, %s143
      %p150 = scmp.eq.s32.totalorder %s34, 1
      %p151 = por %p149, %p150
      %p152 = scmp.ne.s32.totalorder %s143, %s144
      %p153 = scmp.eq.s32.totalorder %s34, 0
      %p154 = por %p152, %p153
      %p155 = scmp.ne.s32.totalorder %s143, %s144
      %p156 = scmp.eq.s32.totalorder %s35, 1
      %p157 = por %p155, %p156
      %p159 = scmp.ne.s32.totalorder %s144, %s158
      %p160 = scmp.eq.s32.totalorder %s35, 0
      %p161 = por %p159, %p160
      %s163 = sadd.s32 %s162, 1
      %p166 = scmp.eq.s32.totalorder %s29, 1
      %p167 = scmp.ne.s32.totalorder %s162, %s164
      %p168 = scmp.eq.s32.totalorder %s29, 0
      %p169 = por %p167, %p168
      %p170 = scmp.ne.s32.totalorder %s162, %s164
      %p171 = scmp.eq.s32.totalorder %s34, 1
      %p172 = por %p170, %p171
      %p173 = scmp.ne.s32.totalorder %s164, %s165
      %p174 = scmp.eq.s32.totalorder %s34, 0
      %p175 = por %p173, %p174
      %p176 = scmp.ne.s32.totalorder %s164, %s165
      %p177 = scmp.eq.s32.totalorder %s35, 1
      %p178 = por %p176, %p177
      %p180 = scmp.ne.s32.totalorder %s165, %s179
      %p181 = scmp.eq.s32.totalorder %s35, 0
      %p182 = por %p180, %p181
      %s184 = sadd.s32 %s183, 1
      %p187 = scmp.eq.s32.totalorder %s29, 1
      %p188 = scmp.ne.s32.totalorder %s183, %s185
      %p189 = scmp.eq.s32.totalorder %s29, 0
      %p190 = por %p188, %p189
      %p191 = scmp.ne.s32.totalorder %s183, %s185
      %p192 = scmp.eq.s32.totalorder %s34, 1
      %p193 = por %p191, %p192
      %p194 = scmp.ne.s32.totalorder %s185, %s186
      %p195 = scmp.eq.s32.totalorder %s34, 0
      %p196 = por %p194, %p195
      %p197 = scmp.ne.s32.totalorder %s185, %s186
      %p198 = scmp.eq.s32.totalorder %s35, 1
      %p199 = por %p197, %p198
      %p201 = scmp.ne.s32.totalorder %s186, %s200
      %p202 = scmp.eq.s32.totalorder %s35, 0
      %p203 = por %p201, %p202
      %s205 = sadd.s32 %s204, 1
      %p208 = scmp.eq.s32.totalorder %s29, 1
      %p209 = scmp.ne.s32.totalorder %s204, %s206
      %p210 = scmp.eq.s32.totalorder %s29, 0
      %p211 = por %p209, %p210
      %p212 = scmp.ne.s32.totalorder %s204, %s206
      %p213 = scmp.eq.s32.totalorder %s34, 1
      %p214 = por %p212, %p213
      %p215 = scmp.ne.s32.totalorder %s206, %s207
      %p216 = scmp.eq.s32.totalorder %s34, 0
      %p217 = por %p215, %p216
      %p218 = scmp.ne.s32.totalorder %s206, %s207
      %p219 = scmp.eq.s32.totalorder %s35, 1
      %p220 = por %p218, %p219
      %p222 = scmp.ne.s32.totalorder %s207, %s221
      %p223 = scmp.eq.s32.totalorder %s35, 0
      %p224 = por %p222, %p223
      %s226 = sadd.s32 %s225, 1
      %p229 = scmp.eq.s32.totalorder %s29, 1
      %p230 = scmp.ne.s32.totalorder %s225, %s227
      %p231 = scmp.eq.s32.totalorder %s29, 0
      %p232 = por %p230, %p231
      %p233 = scmp.ne.s32.totalorder %s225, %s227
      %p234 = scmp.eq.s32.totalorder %s34, 1
      %p235 = por %p233, %p234
      %p236 = scmp.ne.s32.totalorder %s227, %s228
      %p237 = scmp.eq.s32.totalorder %s34, 0
      %p238 = por %p236, %p237
      %p239 = scmp.ne.s32.totalorder %s227, %s228
      %p240 = scmp.eq.s32.totalorder %s35, 1
      %p241 = por %p239, %p240
      %p243 = scmp.ne.s32.totalorder %s228, %s242
      %p244 = scmp.eq.s32.totalorder %s35, 0
      %p245 = por %p243, %p244
      %s247 = sadd.s32 %s246, 1
      %p250 = scmp.eq.s32.totalorder %s29, 1
      %p251 = scmp.ne.s32.totalorder %s246, %s248
      %p252 = scmp.eq.s32.totalorder %s29, 0
      %p253 = por %p251, %p252
      %p254 = scmp.ne.s32.totalorder %s246, %s248
      %p255 = scmp.eq.s32.totalorder %s34, 1
      %p256 = por %p254, %p255
      %p257 = scmp.ne.s32.totalorder %s248, %s249
      %p258 = scmp.eq.s32.totalorder %s34, 0
      %p259 = por %p257, %p258
      %p260 = scmp.ne.s32.totalorder %s248, %s249
      %p261 = scmp.eq.s32.totalorder %s35, 1
      %p262 = por %p260, %p261
      %p264 = scmp.ne.s32.totalorder %s249, %s263
      %p265 = scmp.eq.s32.totalorder %s35, 0
      %p266 = por %p264, %p265
      %s268 = sadd.s32 %s267, 1
      %p271 = scmp.eq.s32.totalorder %s29, 1
      %p272 = scmp.ne.s32.totalorder %s267, %s269
      %p273 = scmp.eq.s32.totalorder %s29, 0
      %p274 = por %p272, %p273
      %p275 = scmp.ne.s32.totalorder %s267, %s269
      %p276 = scmp.eq.s32.totalorder %s34, 1
      %p277 = por %p275, %p276
      %p278 = scmp.ne.s32.totalorder %s269, %s270
      %p279 = scmp.eq.s32.totalorder %s34, 0
      %p280 = por %p278, %p279
      %p281 = scmp.ne.s32.totalorder %s269, %s270
      %p282 = scmp.eq.s32.totalorder %s35, 1
      %p283 = por %p281, %p282
      %p285 = scmp.ne.s32.totalorder %s270, %s284
      %p286 = scmp.eq.s32.totalorder %s35, 0
      %p287 = por %p285, %p286
      %s289 = sadd.s32 %s288, 1
      %p292 = scmp.eq.s32.totalorder %s29, 1
      %p293 = scmp.ne.s32.totalorder %s288, %s290
      %p294 = scmp.eq.s32.totalorder %s29, 0
      %p295 = por %p293, %p294
      %p296 = scmp.ne.s32.totalorder %s288, %s290
      %p297 = scmp.eq.s32.totalorder %s34, 1
      %p298 = por %p296, %p297
      %p299 = scmp.ne.s32.totalorder %s290, %s291
      %p300 = scmp.eq.s32.totalorder %s34, 0
      %p301 = por %p299, %p300
      %p302 = scmp.ne.s32.totalorder %s290, %s291
      %p303 = scmp.eq.s32.totalorder %s35, 1
      %p304 = por %p302, %p303
      %p306 = scmp.ne.s32.totalorder %s291, %s305
      %p307 = scmp.eq.s32.totalorder %s35, 0
      %p308 = por %p306, %p307
      %s309 = ssub.s32 %s29, %s36
      %p310 = scmp.eq.s32.totalorder %s309, 0
      %s312 = sadd.s32 %s311, 1
      %s313 = scalar_select %p310, %s311, %s312
      %p316 = pneg %p310
      %p317 = scmp.eq.s32.totalorder %s29, 1
      %p318 = por %p316, %p317
      %p319 = scmp.ne.s32.totalorder %s311, %s314
      %p320 = scmp.eq.s32.totalorder %s29, 0
      %p321 = por %p319, %p320
      %p322 = scmp.ne.s32.totalorder %s311, %s314
      %p323 = scmp.eq.s32.totalorder %s34, 1
      %p324 = por %p322, %p323
      %p325 = scmp.ne.s32.totalorder %s314, %s315
      %p326 = scmp.eq.s32.totalorder %s34, 0
      %p327 = por %p325, %p326
      %p328 = scmp.ne.s32.totalorder %s314, %s315
      %p329 = scmp.eq.s32.totalorder %s35, 1
      %p330 = por %p328, %p329
      %p332 = scmp.ne.s32.totalorder %s315, %s331
      %p333 = scmp.eq.s32.totalorder %s35, 0
      %p334 = por %p332, %p333
      %p335 = scmp.le.s32.totalorder 1, %s29
      %p336 = scmp.lt.s32.totalorder %s29, 3
      %p337 = pnand %p335, %p336
      %p338 = pneg %p337
      // Predicated region
      $region9: #{tpu_custom_call.1} parent=5 // pred_check
        _
      $region10: #{tpu_custom_call.1} parent=5 // pred_check_branch
        %340 = sbr.rel (%p337) target = $region12
      $region11: #{tpu_custom_call.1} parent=5 // pred_region
        %s341 = ssub.s32 %s29, 1
        // Predicated region
        $region13: #{tpu_custom_call.1} parent=11 // pred_check
          %p342 = pneg %p154
        $region14: #{tpu_custom_call.1} parent=11 // pred_check_branch
          %344 = sbr.rel (%p342) target = $region16
        $region15: #{tpu_custom_call.1} parent=11 // pred_region
          %s346 = ssub.s32 1024, 1024
          %347 = vsyncadd [#allocation6], %s346
          %s348 = sshll.u32 [#allocation7], 4
          %s349 = int_to_ptr.vmem [resolvable:$true] %s348
          %354 = dma.hbm_to_vmem [thread:$0]  %s4, 1024, %s349, [#allocation6], 128, 128, 8
        $region16: #{tpu_custom_call.1} parent=11 // pred_fallthru
          _
        // Predicated region
        $region17: #{tpu_custom_call.1} parent=11 // pred_check
          %p355 = pneg %p175
        $region18: #{tpu_custom_call.1} parent=11 // pred_check_branch
          %357 = sbr.rel (%p355) target = $region20
        $region19: #{tpu_custom_call.1} parent=11 // pred_region
          %s359 = ssub.s32 512, 512
          %360 = vsyncadd [#allocation9], %s359
          %s361 = sshll.u32 [#allocation8], 4
          %s362 = int_to_ptr.vmem [resolvable:$true] %s361
          %367 = dma.hbm_to_vmem [thread:$0]  %s5, 512, %s362, [#allocation9], 128, 128, 8
        $region20: #{tpu_custom_call.1} parent=11 // pred_fallthru
          _
        // Predicated region
        $region21: #{tpu_custom_call.1} parent=11 // pred_check
          %p368 = pneg %p196
        $region22: #{tpu_custom_call.1} parent=11 // pred_check_branch
          %370 = sbr.rel (%p368) target = $region24
        $region23: #{tpu_custom_call.1} parent=11 // pred_region
          %s372 = ssub.s32 512, 512
          %373 = vsyncadd [#allocation9], %s372
          %s374 = sshll.u32 [#allocation10], 4
          %s375 = int_to_ptr.vmem [resolvable:$true] %s374
          %380 = dma.hbm_to_vmem [thread:$0]  %s6, 512, %s375, [#allocation9], 128, 128, 8
        $region24: #{tpu_custom_call.1} parent=11 // pred_fallthru
          _
        // Predicated region
        $region25: #{tpu_custom_call.1} parent=11 // pred_check
          %p381 = pneg %p217
        $region26: #{tpu_custom_call.1} parent=11 // pred_check_branch
          %383 = sbr.rel (%p381) target = $region28
        $region27: #{tpu_custom_call.1} parent=11 // pred_region
          _
        $region28: #{tpu_custom_call.1} parent=11 // pred_fallthru
          _
        // Predicated region
        $region29: #{tpu_custom_call.1} parent=11 // pred_check
          %p384 = pneg %p238
        $region30: #{tpu_custom_call.1} parent=11 // pred_check_branch
          %386 = sbr.rel (%p384) target = $region32
        $region31: #{tpu_custom_call.1} parent=11 // pred_region
          %s388 = ssub.s32 3072, 3072
          %389 = vsyncadd [#allocation12], %s388
          %s390 = sshll.u32 [#allocation11], 4
          %s391 = int_to_ptr.vmem [resolvable:$true] %s390
          %396 = dma.hbm_to_vmem [thread:$0]  %s8, 3072, %s391, [#allocation12], 128, 128, 8
        $region32: #{tpu_custom_call.1} parent=11 // pred_fallthru
          _
        // Predicated region
        $region33: #{tpu_custom_call.1} parent=11 // pred_check
          %p397 = pneg %p259
        $region34: #{tpu_custom_call.1} parent=11 // pred_check_branch
          %399 = sbr.rel (%p397) target = $region36
        $region35: #{tpu_custom_call.1} parent=11 // pred_region
          _
        $region36: #{tpu_custom_call.1} parent=11 // pred_fallthru
          _
        // Predicated region
        $region37: #{tpu_custom_call.1} parent=11 // pred_check
          %p400 = pneg %p280
        $region38: #{tpu_custom_call.1} parent=11 // pred_check_branch
          %402 = sbr.rel (%p400) target = $region40
        $region39: #{tpu_custom_call.1} parent=11 // pred_region
          %s404 = ssub.s32 1024, 1024
          %405 = vsyncadd [#allocation12], %s404
          %s406 = sshll.u32 [#allocation13], 4
          %s407 = int_to_ptr.vmem [resolvable:$true] %s406
          %412 = dma.hbm_to_vmem [thread:$0]  %s10, 1024, %s407, [#allocation12], 128, 128, 8
        $region40: #{tpu_custom_call.1} parent=11 // pred_fallthru
          _
        // Predicated region
        $region41: #{tpu_custom_call.1} parent=11 // pred_check
          %p413 = pneg %p301
        $region42: #{tpu_custom_call.1} parent=11 // pred_check_branch
          %415 = sbr.rel (%p413) target = $region44
        $region43: #{tpu_custom_call.1} parent=11 // pred_region
          _
        $region44: #{tpu_custom_call.1} parent=11 // pred_fallthru
          _
      $region12: #{tpu_custom_call.1} parent=5 // pred_fallthru
        _
      %p416 = scmp.lt.s32.totalorder %s29, 2
      // Predicated region
      $region45: #{tpu_custom_call.1} parent=5 // pred_check
        %p417 = pneg %p416
      $region46: #{tpu_custom_call.1} parent=5 // pred_check_branch
        %419 = sbr.rel (%p417) target = $region48
      $region47: #{tpu_custom_call.1} parent=5 // pred_region
        // Predicated region
        $region49: #{tpu_custom_call.1} parent=47 // pred_check
          %p420 = pneg %p49
        $region50: #{tpu_custom_call.1} parent=47 // pred_check_branch
          %422 = sbr.rel (%p420) target = $region52
        $region51: #{tpu_custom_call.1} parent=47 // pred_region
          %s423 = sand.u32 %s39, 1
          %s424 = scalar_lea.sflag [#allocation3], %s423
          %s425 = sand.u32 %s39, 1
          %s426 = smul.addr %s425, 16
          %s427 = scalar_lea.vmem [#allocation2], %s426
          %s429 = ssub.s32 256, 256
          %430 = vsyncadd %s424, %s429
          %s431 = smul.addr %s29, 2
          %s432 = smul.addr %s431, 128
          %s433 = scalar_lea.hbm %s0, %s432
          %s434 = sshll.u32 %s427, 4
          %s435 = int_to_ptr.vmem [resolvable:$true] %s434
          %440 = dma.hbm_to_vmem [thread:$0]  %s433, 256, %s435, %s424, 128, 128, 8
        $region52: #{tpu_custom_call.1} parent=47 // pred_fallthru
          _
        // Predicated region
        $region53: #{tpu_custom_call.1} parent=47 // pred_check
          %p441 = pneg %p75
        $region54: #{tpu_custom_call.1} parent=47 // pred_check_branch
          %443 = sbr.rel (%p441) target = $region56
        $region55: #{tpu_custom_call.1} parent=47 // pred_region
          %s444 = sand.u32 %s29, 1
          %s445 = scalar_lea.sflag [#allocation6], %s444
          %s446 = sand.u32 %s65, 1
          %s447 = smul.addr %s446, 16
          %s448 = scalar_lea.vmem [#allocation5], %s447
          %s450 = ssub.s32 256, 256
          %451 = vsyncadd %s445, %s450
          %s452 = smul.addr %s29, 2
          %s453 = smul.addr %s452, 128
          %s454 = scalar_lea.hbm %s1, %s453
          %s455 = sshll.u32 %s448, 4
          %s456 = int_to_ptr.vmem [resolvable:$true] %s455
          %461 = dma.hbm_to_vmem [thread:$0]  %s454, 256, %s456, %s445, 128, 128, 8
        $region56: #{tpu_custom_call.1} parent=47 // pred_fallthru
          _
        // Predicated region
        $region57: #{tpu_custom_call.1} parent=47 // pred_check
          %p462 = pneg %p101
        $region58: #{tpu_custom_call.1} parent=47 // pred_check_branch
          %464 = sbr.rel (%p462) target = $region60
        $region59: #{tpu_custom_call.1} parent=47 // pred_region
          %p465 = scmp.lt.s32.totalorder %s29, 1
          %s466 = scalar_select %p465, %s29, 1
          %s467 = scalar_lea.vmem %s2, %s466
        $region60: #{tpu_custom_call.1} parent=47 // pred_fallthru
          _
        // Predicated region
        $region61: #{tpu_custom_call.1} parent=47 // pred_check
          %p468 = pneg %p127
        $region62: #{tpu_custom_call.1} parent=47 // pred_check_branch
          %470 = sbr.rel (%p468) target = $region64
        $region63: #{tpu_custom_call.1} parent=47 // pred_region
          %p471 = scmp.lt.s32.totalorder %s29, 1
          %s472 = scalar_select %p471, %s29, 1
          %s473 = scalar_lea.vmem %s3, %s472
        $region64: #{tpu_custom_call.1} parent=47 // pred_fallthru
          _
      $region48: #{tpu_custom_call.1} parent=5 // pred_fallthru
        _
      %p474 = scmp.le.s32.totalorder 1, %s29
      %p475 = scmp.lt.s32.totalorder %s29, 3
      %p476 = pnand %p474, %p475
      %p477 = pneg %p476
      // Predicated region
      $region65: #{tpu_custom_call.1} parent=5 // pred_check
        _
      $region66: #{tpu_custom_call.1} parent=5 // pred_check_branch
        %479 = sbr.rel (%p476) target = $region68
      $region67: #{tpu_custom_call.1} parent=5 // pred_region
        %s480 = ssub.s32 %s29, 1
        %s481 = sand.u32 %s42, 1
        %s482 = scalar_lea.sflag [#allocation3], %s481
        %s483 = sand.u32 %s42, 1
        %s484 = smul.addr %s483, 16
        %s485 = scalar_lea.vmem [#allocation2], %s484
        // Predicated region
        $region69: #{tpu_custom_call.1} parent=67 // pred_check
          %p486 = pneg %p55
        $region70: #{tpu_custom_call.1} parent=67 // pred_check_branch
          %488 = sbr.rel (%p486) target = $region72
        $region71: #{tpu_custom_call.1} parent=67 // pred_region
          %489 = dma.done %s482, 256
        $region72: #{tpu_custom_call.1} parent=67 // pred_fallthru
          _
        %s490 = sand.u32 %s34, 1
        %s491 = scalar_lea.sflag [#allocation6], %s490
        %s492 = sand.u32 %s68, 1
        %s493 = smul.addr %s492, 16
        %s494 = scalar_lea.vmem [#allocation5], %s493
        // Predicated region
        $region73: #{tpu_custom_call.1} parent=67 // pred_check
          %p495 = pneg %p81
        $region74: #{tpu_custom_call.1} parent=67 // pred_check_branch
          %497 = sbr.rel (%p495) target = $region76
        $region75: #{tpu_custom_call.1} parent=67 // pred_region
          %498 = dma.done %s491, 256
        $region76: #{tpu_custom_call.1} parent=67 // pred_fallthru
          _
        // Predicated region
        $region77: #{tpu_custom_call.1} parent=67 // pred_check
          %p499 = pneg %p154
        $region78: #{tpu_custom_call.1} parent=67 // pred_check_branch
          %501 = sbr.rel (%p499) target = $region80
        $region79: #{tpu_custom_call.1} parent=67 // pred_region
          %502 = dma.done [#allocation6], 1024
        $region80: #{tpu_custom_call.1} parent=67 // pred_fallthru
          _
        // Predicated region
        $region81: #{tpu_custom_call.1} parent=67 // pred_check
          %p503 = pneg %p175
        $region82: #{tpu_custom_call.1} parent=67 // pred_check_branch
          %505 = sbr.rel (%p503) target = $region84
        $region83: #{tpu_custom_call.1} parent=67 // pred_region
          %506 = dma.done [#allocation9], 512
        $region84: #{tpu_custom_call.1} parent=67 // pred_fallthru
          _
        // Predicated region
        $region85: #{tpu_custom_call.1} parent=67 // pred_check
          %p507 = pneg %p196
        $region86: #{tpu_custom_call.1} parent=67 // pred_check_branch
          %509 = sbr.rel (%p507) target = $region88
        $region87: #{tpu_custom_call.1} parent=67 // pred_region
          %510 = dma.done [#allocation9], 512
        $region88: #{tpu_custom_call.1} parent=67 // pred_fallthru
          _
        // Predicated region
        $region89: #{tpu_custom_call.1} parent=67 // pred_check
          %p511 = pneg %p238
        $region90: #{tpu_custom_call.1} parent=67 // pred_check_branch
          %513 = sbr.rel (%p511) target = $region92
        $region91: #{tpu_custom_call.1} parent=67 // pred_region
          %514 = dma.done [#allocation12], 3072
        $region92: #{tpu_custom_call.1} parent=67 // pred_fallthru
          _
        // Predicated region
        $region93: #{tpu_custom_call.1} parent=67 // pred_check
          %p515 = pneg %p280
        $region94: #{tpu_custom_call.1} parent=67 // pred_check_branch
          %517 = sbr.rel (%p515) target = $region96
        $region95: #{tpu_custom_call.1} parent=67 // pred_region
          %518 = dma.done [#allocation12], 1024
        $region96: #{tpu_custom_call.1} parent=67 // pred_fallthru
          _
        %s519 = sand.u32 %s42, 1
        %s520 = scalar_lea.sflag [#allocation3], %s519
        %s521 = sand.u32 %s42, 1
        %s522 = smul.addr %s521, 16
        %s523 = scalar_lea.vmem [#allocation2], %s522
        %p524 = pneg %p55
        %p525 = pneg %p52
        %s526 = sand.u32 %s34, 1
        %s527 = scalar_lea.sflag [#allocation6], %s526
        %s528 = sand.u32 %s68, 1
        %s529 = smul.addr %s528, 16
        %s530 = scalar_lea.vmem [#allocation5], %s529
        %p531 = pneg %p81
        %p532 = pneg %p78
        %p533 = scmp.lt.s32.totalorder %s34, 1
        %s534 = scalar_select %p533, %s34, 1
        %s535 = scalar_lea.vmem %s2, %s534
        %p536 = pneg %p107
        %p537 = pneg %p104
        %p538 = scmp.lt.s32.totalorder %s34, 1
        %s539 = scalar_select %p538, %s34, 1
        %s540 = scalar_lea.vmem %s3, %s539
        %p541 = pneg %p133
        %p542 = pneg %p130
        %p543 = pneg %p154
        %p544 = pneg %p151
        %p545 = pneg %p175
        %p546 = pneg %p172
        %p547 = pneg %p196
        %p548 = pneg %p193
        %p549 = pneg %p217
        %p550 = pneg %p214
        %p551 = pneg %p238
        %p552 = pneg %p235
        %p553 = pneg %p259
        %p554 = pneg %p256
        %p555 = pneg %p280
        %p556 = pneg %p277
        %p557 = pneg %p301
        %p558 = pneg %p298
        %p559 = pneg %p327
        %p560 = pneg %p324
        %s561 = sand.u32 %s314, 1
        %s562 = scalar_lea.sflag [#allocation4], %s561
        %s563 = sand.u32 %s314, 1
        %s564 = smul.addr %s563, 16
        %s565 = scalar_lea.vmem [#allocation14], %s564
        %p566 = scmp.lt.s32.totalorder %s34, 1
        %s567 = scalar_select %p566, %s34, 1
        %s568 = scalar_lea.vmem %s2, %s567
        %p569 = scmp.lt.s32.totalorder %s34, 1
        %s570 = scalar_select %p569, %s34, 1
        %s571 = scalar_lea.vmem %s3, %s570
        %v572 = vld [vmem:[%s485] sm:$0xff]
        %v573 = vld [vmem:[%s485 + $0x8] sm:$0xff]
        %v574 = vld [vmem:[%s494] sm:$0xff]
        %v575 = vld [vmem:[%s494 + $0x8] sm:$0xff]
        %v576 = vld [vmem:[%s568] sm:$0x1]
        %v577 = vld [vmem:[%s571] sm:$0x1]
        %v578 = vld [vmem:[#allocation7] sm:$0xff]
        %v579 = vld [vmem:[#allocation7 + $0x8] sm:$0xff]
        %v580 = vld [vmem:[#allocation7 + $0x10] sm:$0xff]
        %v581 = vld [vmem:[#allocation7 + $0x18] sm:$0xff]
        %v582 = vld [vmem:[#allocation7 + $0x20] sm:$0xff]
        %v583 = vld [vmem:[#allocation7 + $0x28] sm:$0xff]
        %v584 = vld [vmem:[#allocation7 + $0x30] sm:$0xff]
        %v585 = vld [vmem:[#allocation7 + $0x38] sm:$0xff]
        %vm586 = vcmask 523264
        %v588 = vsel %vm586, %v576, 0
        %590 = vmatprep.subr.mxu0 0.0
        %591 = vmatpush1.msra.mxu0 0.0
        %592 = vmatprep.subr.mxu0 0.0
        %593 = vmatpush1.msra.mxu0 0.0
        %594 = vmatprep.subr.mxu0 0.0
        %595 = vmatpush1.msra.mxu0 0.0
        %596 = vmatprep.subr.mxu0 0.0
        %597 = vmatpush1.msra.mxu0 0.0
        %598 = vmatprep.subr.mxu0 0.0
        %599 = vmatpush1.msra.mxu0 0.0
        %600 = vmatprep.subr.mxu0 0.0
        %601 = vmatpush1.msra.mxu0 0.0
        %602 = vmatprep.subr.mxu0 0.0
        %603 = vmatpush1.msra.mxu0 0.0
        %604 = vmatprep.subr.mxu0 0.0
        %605 = vmatpush1.msra.mxu0 0.0
        %606 = vmatprep.subr.mxu0 0.0
        %607 = vmatpush1.msra.mxu0 %v585
        %608 = vmatprep.subr.mxu0 0.0
        %609 = vmatpush1.msra.mxu0 %v584
        %610 = vmatprep.subr.mxu0 0.0
        %611 = vmatpush1.msra.mxu0 %v583
        %612 = vmatprep.subr.mxu0 0.0
        %613 = vmatpush1.msra.mxu0 %v582
        %614 = vmatprep.subr.mxu0 0.0
        %615 = vmatpush1.msra.mxu0 %v581
        %616 = vmatprep.subr.mxu0 0.0
        %617 = vmatpush1.msra.mxu0 %v580
        %618 = vmatprep.subr.mxu0 0.0
        %619 = vmatpush1.msra.mxu0 %v579
        %620 = vmatprep.subr.mxu0 0.0
        %621 = vmatpush1.msra.mxu0 %v578
        %622 = vmatprep.subr.mxu0 0.0
        %623 = vmatpush2.msra.mxu0 0.0
        %624 = vmatprep.subr.mxu0 0.0
        %625 = vmatpush2.msra.mxu0 0.0
        %626 = vmatprep.subr.mxu0 0.0
        %627 = vmatpush2.msra.mxu0 0.0
        %628 = vmatprep.subr.mxu0 0.0
        %629 = vmatpush2.msra.mxu0 0.0
        %630 = vmatprep.subr.mxu0 0.0
        %631 = vmatpush2.msra.mxu0 0.0
        %632 = vmatprep.subr.mxu0 0.0
        %633 = vmatpush2.msra.mxu0 0.0
        %634 = vmatprep.subr.mxu0 0.0
        %635 = vmatpush2.msra.mxu0 0.0
        %636 = vmatprep.subr.mxu0 0.0
        %637 = vmatpush2.msra.mxu0 0.0
        %638 = vmatprep.subr.mxu0 0.0
        %639 = vmatpush2.msra.mxu0 0.0
        %640 = vmatprep.subr.mxu0 0.0
        %641 = vmatpush2.msra.mxu0 0.0
        %642 = vmatprep.subr.mxu0 0.0
        %643 = vmatpush2.msra.mxu0 0.0
        %644 = vmatprep.subr.mxu0 0.0
        %645 = vmatpush2.msra.mxu0 0.0
        %646 = vmatprep.subr.mxu0 0.0
        %647 = vmatpush2.msra.mxu0 0.0
        %648 = vmatprep.subr.mxu0 0.0
        %649 = vmatpush2.msra.mxu0 0.0
        %650 = vmatprep.subr.mxu0 0.0
        %651 = vmatpush2.msra.mxu0 0.0
        %652 = vmatprep.subr.mxu0 0.0
        %653 = vmatpush2.msra.mxu0 0.0
        %654 = vmatprep.mubr.f32.mxu0 0.0
        %655 = vmatmul.mubr.f32.gmra.mxu0 %v588
        %v656 = vpop.f32.mrf.mxu0
        %v657 = vadd.f32 0.0, %v656
        %v658 = vpop.f32.mrf.mxu0
        %659 = vdwg.mxu0
        %v660 = vld [vmem:[#allocation8] sm:$0xff]
        %v661 = vld [vmem:[#allocation8 + $0x8] sm:$0xff]
        %v662 = vld [vmem:[#allocation8 + $0x10] sm:$0xff]
        %v663 = vld [vmem:[#allocation8 + $0x18] sm:$0xff]
        %vm664 = vcmask 261120
        %v666 = vsel %vm664, %v577, 0
        %668 = vmatprep.subr.mxu0 0.0
        %669 = vmatpush1.msra.mxu0 0.0
        %670 = vmatprep.subr.mxu0 0.0
        %671 = vmatpush1.msra.mxu0 0.0
        %672 = vmatprep.subr.mxu0 0.0
        %673 = vmatpush1.msra.mxu0 0.0
        %674 = vmatprep.subr.mxu0 0.0
        %675 = vmatpush1.msra.mxu0 0.0
        %676 = vmatprep.subr.mxu0 0.0
        %677 = vmatpush1.msra.mxu0 0.0
        %678 = vmatprep.subr.mxu0 0.0
        %679 = vmatpush1.msra.mxu0 0.0
        %680 = vmatprep.subr.mxu0 0.0
        %681 = vmatpush1.msra.mxu0 0.0
        %682 = vmatprep.subr.mxu0 0.0
        %683 = vmatpush1.msra.mxu0 0.0
        %684 = vmatprep.subr.mxu0 0.0
        %685 = vmatpush1.msra.mxu0 0.0
        %686 = vmatprep.subr.mxu0 0.0
        %687 = vmatpush1.msra.mxu0 0.0
        %688 = vmatprep.subr.mxu0 0.0
        %689 = vmatpush1.msra.mxu0 0.0
        %690 = vmatprep.subr.mxu0 0.0
        %691 = vmatpush1.msra.mxu0 0.0
        %692 = vmatprep.subr.mxu0 0.0
        %693 = vmatpush1.msra.mxu0 %v663
        %694 = vmatprep.subr.mxu0 0.0
        %695 = vmatpush1.msra.mxu0 %v662
        %696 = vmatprep.subr.mxu0 0.0
        %697 = vmatpush1.msra.mxu0 %v661
        %698 = vmatprep.subr.mxu0 0.0
        %699 = vmatpush1.msra.mxu0 %v660
        %700 = vmatprep.subr.mxu0 0.0
        %701 = vmatpush2.msra.mxu0 0.0
        %702 = vmatprep.subr.mxu0 0.0
        %703 = vmatpush2.msra.mxu0 0.0
        %704 = vmatprep.subr.mxu0 0.0
        %705 = vmatpush2.msra.mxu0 0.0
        %706 = vmatprep.subr.mxu0 0.0
        %707 = vmatpush2.msra.mxu0 0.0
        %708 = vmatprep.subr.mxu0 0.0
        %709 = vmatpush2.msra.mxu0 0.0
        %710 = vmatprep.subr.mxu0 0.0
        %711 = vmatpush2.msra.mxu0 0.0
        %712 = vmatprep.subr.mxu0 0.0
        %713 = vmatpush2.msra.mxu0 0.0
        %714 = vmatprep.subr.mxu0 0.0
        %715 = vmatpush2.msra.mxu0 0.0
        %716 = vmatprep.subr.mxu0 0.0
        %717 = vmatpush2.msra.mxu0 0.0
        %718 = vmatprep.subr.mxu0 0.0
        %719 = vmatpush2.msra.mxu0 0.0
        %720 = vmatprep.subr.mxu0 0.0
        %721 = vmatpush2.msra.mxu0 0.0
        %722 = vmatprep.subr.mxu0 0.0
        %723 = vmatpush2.msra.mxu0 0.0
        %724 = vmatprep.subr.mxu0 0.0
        %725 = vmatpush2.msra.mxu0 0.0
        %726 = vmatprep.subr.mxu0 0.0
        %727 = vmatpush2.msra.mxu0 0.0
        %728 = vmatprep.subr.mxu0 0.0
        %729 = vmatpush2.msra.mxu0 0.0
        %730 = vmatprep.subr.mxu0 0.0
        %731 = vmatpush2.msra.mxu0 0.0
        %732 = vmatprep.mubr.f32.mxu0 0.0
        %733 = vmatmul.mubr.f32.gmra.mxu0 %v666
        %v734 = vpop.f32.mrf.mxu0
        %v735 = vadd.f32 0.0, %v734
        %v736 = vpop.f32.mrf.mxu0
        %737 = vdwg.mxu0
        %v738 = vld [vmem:[#allocation10] sm:$0xff]
        %v739 = vld [vmem:[#allocation10 + $0x8] sm:$0xff]
        %v740 = vld [vmem:[#allocation10 + $0x10] sm:$0xff]
        %v741 = vld [vmem:[#allocation10 + $0x18] sm:$0xff]
        %v742 = vld [vmem:[%s7] sm:$0x1]
        %v744 = vlaneseq
        %v745 = vshrl.u32 %v744, 7
        %v746 = vsub.s32 0, %v745
        %v747 = vrot.slane %v742, %v746
        %v750 = vsel %vm664, %v574, 0
        %v753 = vsel %vm664, %v575, 0
        %755 = vmatprep.subr.mxu0 0.0
        %756 = vmatpush1.msra.mxu0 0.0
        %757 = vmatprep.subr.mxu0 0.0
        %758 = vmatpush1.msra.mxu0 0.0
        %759 = vmatprep.subr.mxu0 0.0
        %760 = vmatpush1.msra.mxu0 0.0
        %761 = vmatprep.subr.mxu0 0.0
        %762 = vmatpush1.msra.mxu0 0.0
        %763 = vmatprep.subr.mxu0 0.0
        %764 = vmatpush1.msra.mxu0 0.0
        %765 = vmatprep.subr.mxu0 0.0
        %766 = vmatpush1.msra.mxu0 0.0
        %767 = vmatprep.subr.mxu0 0.0
        %768 = vmatpush1.msra.mxu0 0.0
        %769 = vmatprep.subr.mxu0 0.0
        %770 = vmatpush1.msra.mxu0 0.0
        %771 = vmatprep.subr.mxu0 0.0
        %772 = vmatpush1.msra.mxu0 0.0
        %773 = vmatprep.subr.mxu0 0.0
        %774 = vmatpush1.msra.mxu0 0.0
        %775 = vmatprep.subr.mxu0 0.0
        %776 = vmatpush1.msra.mxu0 0.0
        %777 = vmatprep.subr.mxu0 0.0
        %778 = vmatpush1.msra.mxu0 0.0
        %779 = vmatprep.subr.mxu0 0.0
        %780 = vmatpush1.msra.mxu0 %v741
        %781 = vmatprep.subr.mxu0 0.0
        %782 = vmatpush1.msra.mxu0 %v740
        %783 = vmatprep.subr.mxu0 0.0
        %784 = vmatpush1.msra.mxu0 %v739
        %785 = vmatprep.subr.mxu0 0.0
        %786 = vmatpush1.msra.mxu0 %v738
        %787 = vmatprep.subr.mxu0 0.0
        %788 = vmatpush2.msra.mxu0 0.0
        %789 = vmatprep.subr.mxu0 0.0
        %790 = vmatpush2.msra.mxu0 0.0
        %791 = vmatprep.subr.mxu0 0.0
        %792 = vmatpush2.msra.mxu0 0.0
        %793 = vmatprep.subr.mxu0 0.0
        %794 = vmatpush2.msra.mxu0 0.0
        %795 = vmatprep.subr.mxu0 0.0
        %796 = vmatpush2.msra.mxu0 0.0
        %797 = vmatprep.subr.mxu0 0.0
        %798 = vmatpush2.msra.mxu0 0.0
        %799 = vmatprep.subr.mxu0 0.0
        %800 = vmatpush2.msra.mxu0 0.0
        %801 = vmatprep.subr.mxu0 0.0
        %802 = vmatpush2.msra.mxu0 0.0
        %803 = vmatprep.subr.mxu0 0.0
        %804 = vmatpush2.msra.mxu0 0.0
        %805 = vmatprep.subr.mxu0 0.0
        %806 = vmatpush2.msra.mxu0 0.0
        %807 = vmatprep.subr.mxu0 0.0
        %808 = vmatpush2.msra.mxu0 0.0
        %809 = vmatprep.subr.mxu0 0.0
        %810 = vmatpush2.msra.mxu0 0.0
        %811 = vmatprep.subr.mxu0 0.0
        %812 = vmatpush2.msra.mxu0 0.0
        %813 = vmatprep.subr.mxu0 0.0
        %814 = vmatpush2.msra.mxu0 0.0
        %815 = vmatprep.subr.mxu0 0.0
        %816 = vmatpush2.msra.mxu0 0.0
        %817 = vmatprep.subr.mxu0 0.0
        %818 = vmatpush2.msra.mxu0 0.0
        %819 = vmatprep.mubr.f32.mxu0 0.0
        %820 = vmatmul.mubr.f32.gmra.mxu0 %v750
        %v821 = vpop.f32.mrf.mxu0
        %v822 = vadd.f32 %v747, %v821
        %v823 = vpop.f32.mrf.mxu0
        %824 = vmatprep.mubr.f32.mxu0 0.0
        %825 = vmatmul.mubr.f32.gmra.mxu0 %v753
        %v826 = vpop.f32.mrf.mxu0
        %v827 = vadd.f32 %v747, %v826
        %v828 = vpop.f32.mrf.mxu0
        %829 = vdwg.mxu0
        %v830 = vlaneseq
        %v831 = vshrl.u32 %v830, 7
        %v832 = vsub.s32 0, %v831
        %v833 = vrot.slane %v657, %v832
        %v834 = vadd.f32 %v572, %v833
        %v835 = vadd.f32 %v573, %v833
        %v836 = vadd.f32 %v834, %v822
        %v837 = vadd.f32 %v835, %v827
        %v838 = vlaneseq
        %v839 = vshrl.u32 %v838, 7
        %v840 = vsub.s32 0, %v839
        %v841 = vrot.slane %v735, %v840
        %v842 = vadd.f32 %v836, %v841
        %v843 = vadd.f32 %v837, %v841
        %v844 = vlaneseq
        %v845 = vshrl.u32 %v844, 7
        %v846 = vadd.s32 %v845, 8
        %vm847 = vcmp.gt.s32.totalorder %v845, 0
        %vm848 = vcmp.gt.s32.totalorder %v846, 0
        %v849 = vrot.slane %v842, 7
        %v850 = vrot.slane %v843, 7
        %vm851 = vcmp.lt.s32.totalorder %v845, 1
        %v852 = vsel %vm851, %v849, %v850
        %v853 = vsel %vm851, %v850, %v849
        %v854 = vsel %vm847, 1, 0
        %v855 = vsel %vm848, 1, 0
        %vm856 = vcmp.eq.s32.totalorder %v854, 1
        %vm857 = vcmp.eq.s32.totalorder %v855, 1
        %v858 = vsel %vm856, %v853, 0.0
        %v859 = vsel %vm857, %v852, 0.0
        %vm860 = vcmp.lt.s32.totalorder %v845, 15
        %vm861 = vcmp.lt.s32.totalorder %v846, 15
        %v862 = vrot.slane %v842, 1
        %v863 = vrot.slane %v843, 1
        %vm864 = vcmp.lt.s32.totalorder %v845, 7
        %v865 = vsel %vm864, %v862, %v863
        %v866 = vsel %vm864, %v863, %v862
        %v867 = vsel %vm860, 1, 0
        %v868 = vsel %vm861, 1, 0
        %vm869 = vcmp.eq.s32.totalorder %v867, 1
        %vm870 = vcmp.eq.s32.totalorder %v868, 1
        %v871 = vsel %vm869, %v865, 0.0
        %v872 = vsel %vm870, %v866, 0.0
        %v873 = vld [vmem:[#allocation11] sm:$0xff]
        %v874 = vld [vmem:[#allocation11 + $0x8] sm:$0xff]
        %v875 = vld [vmem:[#allocation11 + $0x10] sm:$0xff]
        %v876 = vld [vmem:[#allocation11 + $0x18] sm:$0xff]
        %v877 = vld [vmem:[#allocation11 + $0x20] sm:$0xff]
        %v878 = vld [vmem:[#allocation11 + $0x28] sm:$0xff]
        %v879 = vld [vmem:[#allocation11 + $0x30] sm:$0xff]
        %v880 = vld [vmem:[#allocation11 + $0x38] sm:$0xff]
        %s881 = scalar_lea.vmem [#allocation11], 64
        %v882 = vld [vmem:[%s881] sm:$0xff]
        %v883 = vld [vmem:[%s881 + $0x8] sm:$0xff]
        %v884 = vld [vmem:[%s881 + $0x10] sm:$0xff]
        %v885 = vld [vmem:[%s881 + $0x18] sm:$0xff]
        %v886 = vld [vmem:[%s881 + $0x20] sm:$0xff]
        %v887 = vld [vmem:[%s881 + $0x28] sm:$0xff]
        %v888 = vld [vmem:[%s881 + $0x30] sm:$0xff]
        %v889 = vld [vmem:[%s881 + $0x38] sm:$0xff]
        %v891 = vsel %vm586, %v842, 0
        %v894 = vsel %vm586, %v843, 0
        %896 = vmatprep.subr.mxu0 0.0
        %897 = vmatpush1.msra.mxu0 0.0
        %898 = vmatprep.subr.mxu0 0.0
        %899 = vmatpush1.msra.mxu0 0.0
        %900 = vmatprep.subr.mxu0 0.0
        %901 = vmatpush1.msra.mxu0 0.0
        %902 = vmatprep.subr.mxu0 0.0
        %903 = vmatpush1.msra.mxu0 0.0
        %904 = vmatprep.subr.mxu0 0.0
        %905 = vmatpush1.msra.mxu0 0.0
        %906 = vmatprep.subr.mxu0 0.0
        %907 = vmatpush1.msra.mxu0 0.0
        %908 = vmatprep.subr.mxu0 0.0
        %909 = vmatpush1.msra.mxu0 0.0
        %910 = vmatprep.subr.mxu0 0.0
        %911 = vmatpush1.msra.mxu0 0.0
        %912 = vmatprep.subr.mxu0 0.0
        %913 = vmatpush1.msra.mxu0 %v889
        %914 = vmatprep.subr.mxu0 0.0
        %915 = vmatpush1.msra.mxu0 %v888
        %916 = vmatprep.subr.mxu0 0.0
        %917 = vmatpush1.msra.mxu0 %v887
        %918 = vmatprep.subr.mxu0 0.0
        %919 = vmatpush1.msra.mxu0 %v886
        %920 = vmatprep.subr.mxu0 0.0
        %921 = vmatpush1.msra.mxu0 %v885
        %922 = vmatprep.subr.mxu0 0.0
        %923 = vmatpush1.msra.mxu0 %v884
        %924 = vmatprep.subr.mxu0 0.0
        %925 = vmatpush1.msra.mxu0 %v883
        %926 = vmatprep.subr.mxu0 0.0
        %927 = vmatpush1.msra.mxu0 %v882
        %928 = vmatprep.subr.mxu0 0.0
        %929 = vmatpush2.msra.mxu0 0.0
        %930 = vmatprep.subr.mxu0 0.0
        %931 = vmatpush2.msra.mxu0 0.0
        %932 = vmatprep.subr.mxu0 0.0
        %933 = vmatpush2.msra.mxu0 0.0
        %934 = vmatprep.subr.mxu0 0.0
        %935 = vmatpush2.msra.mxu0 0.0
        %936 = vmatprep.subr.mxu0 0.0
        %937 = vmatpush2.msra.mxu0 0.0
        %938 = vmatprep.subr.mxu0 0.0
        %939 = vmatpush2.msra.mxu0 0.0
        %940 = vmatprep.subr.mxu0 0.0
        %941 = vmatpush2.msra.mxu0 0.0
        %942 = vmatprep.subr.mxu0 0.0
        %943 = vmatpush2.msra.mxu0 0.0
        %944 = vmatprep.subr.mxu0 0.0
        %945 = vmatpush2.msra.mxu0 0.0
        %946 = vmatprep.subr.mxu0 0.0
        %947 = vmatpush2.msra.mxu0 0.0
        %948 = vmatprep.subr.mxu0 0.0
        %949 = vmatpush2.msra.mxu0 0.0
        %950 = vmatprep.subr.mxu0 0.0
        %951 = vmatpush2.msra.mxu0 0.0
        %952 = vmatprep.subr.mxu0 0.0
        %953 = vmatpush2.msra.mxu0 0.0
        %954 = vmatprep.subr.mxu0 0.0
        %955 = vmatpush2.msra.mxu0 0.0
        %956 = vmatprep.subr.mxu0 0.0
        %957 = vmatpush2.msra.mxu0 0.0
        %958 = vmatprep.subr.mxu0 0.0
        %959 = vmatpush2.msra.mxu0 0.0
        %960 = vmatprep.mubr.f32.mxu0 0.0
        %961 = vmatmul.mubr.f32.gmra.mxu0 %v891
        %v962 = vpop.f32.mrf.mxu0
        %v963 = vadd.f32 0.0, %v962
        %v964 = vpop.f32.mrf.mxu0
        %965 = vmatprep.mubr.f32.mxu0 0.0
        %966 = vmatmul.mubr.f32.gmra.mxu0 %v894
        %v967 = vpop.f32.mrf.mxu0
        %v968 = vadd.f32 0.0, %v967
        %v969 = vpop.f32.mrf.mxu0
        %970 = vdwg.mxu0
        %v972 = vsel %vm586, %v858, 0
        %v975 = vsel %vm586, %v859, 0
        %977 = vmatprep.subr.mxu0 0.0
        %978 = vmatpush1.msra.mxu0 0.0
        %979 = vmatprep.subr.mxu0 0.0
        %980 = vmatpush1.msra.mxu0 0.0
        %981 = vmatprep.subr.mxu0 0.0
        %982 = vmatpush1.msra.mxu0 0.0
        %983 = vmatprep.subr.mxu0 0.0
        %984 = vmatpush1.msra.mxu0 0.0
        %985 = vmatprep.subr.mxu0 0.0
        %986 = vmatpush1.msra.mxu0 0.0
        %987 = vmatprep.subr.mxu0 0.0
        %988 = vmatpush1.msra.mxu0 0.0
        %989 = vmatprep.subr.mxu0 0.0
        %990 = vmatpush1.msra.mxu0 0.0
        %991 = vmatprep.subr.mxu0 0.0
        %992 = vmatpush1.msra.mxu0 0.0
        %993 = vmatprep.subr.mxu0 0.0
        %994 = vmatpush1.msra.mxu0 %v880
        %995 = vmatprep.subr.mxu0 0.0
        %996 = vmatpush1.msra.mxu0 %v879
        %997 = vmatprep.subr.mxu0 0.0
        %998 = vmatpush1.msra.mxu0 %v878
        %999 = vmatprep.subr.mxu0 0.0
        %1000 = vmatpush1.msra.mxu0 %v877
        %1001 = vmatprep.subr.mxu0 0.0
        %1002 = vmatpush1.msra.mxu0 %v876
        %1003 = vmatprep.subr.mxu0 0.0
        %1004 = vmatpush1.msra.mxu0 %v875
        %1005 = vmatprep.subr.mxu0 0.0
        %1006 = vmatpush1.msra.mxu0 %v874
        %1007 = vmatprep.subr.mxu0 0.0
        %1008 = vmatpush1.msra.mxu0 %v873
        %1009 = vmatprep.subr.mxu0 0.0
        %1010 = vmatpush2.msra.mxu0 0.0
        %1011 = vmatprep.subr.mxu0 0.0
        %1012 = vmatpush2.msra.mxu0 0.0
        %1013 = vmatprep.subr.mxu0 0.0
        %1014 = vmatpush2.msra.mxu0 0.0
        %1015 = vmatprep.subr.mxu0 0.0
        %1016 = vmatpush2.msra.mxu0 0.0
        %1017 = vmatprep.subr.mxu0 0.0
        %1018 = vmatpush2.msra.mxu0 0.0
        %1019 = vmatprep.subr.mxu0 0.0
        %1020 = vmatpush2.msra.mxu0 0.0
        %1021 = vmatprep.subr.mxu0 0.0
        %1022 = vmatpush2.msra.mxu0 0.0
        %1023 = vmatprep.subr.mxu0 0.0
        %1024 = vmatpush2.msra.mxu0 0.0
        %1025 = vmatprep.subr.mxu0 0.0
        %1026 = vmatpush2.msra.mxu0 0.0
        %1027 = vmatprep.subr.mxu0 0.0
        %1028 = vmatpush2.msra.mxu0 0.0
        %1029 = vmatprep.subr.mxu0 0.0
        %1030 = vmatpush2.msra.mxu0 0.0
        %1031 = vmatprep.subr.mxu0 0.0
        %1032 = vmatpush2.msra.mxu0 0.0
        %1033 = vmatprep.subr.mxu0 0.0
        %1034 = vmatpush2.msra.mxu0 0.0
        %1035 = vmatprep.subr.mxu0 0.0
        %1036 = vmatpush2.msra.mxu0 0.0
        %1037 = vmatprep.subr.mxu0 0.0
        %1038 = vmatpush2.msra.mxu0 0.0
        %1039 = vmatprep.subr.mxu0 0.0
        %1040 = vmatpush2.msra.mxu0 0.0
        %1041 = vmatprep.mubr.f32.mxu0 0.0
        %1042 = vmatmul.mubr.f32.gmra.mxu0 %v972
        %v1043 = vpop.f32.mrf.mxu0
        %v1044 = vadd.f32 %v963, %v1043
        %v1045 = vpop.f32.mrf.mxu0
        %1046 = vmatprep.mubr.f32.mxu0 0.0
        %1047 = vmatmul.mubr.f32.gmra.mxu0 %v975
        %v1048 = vpop.f32.mrf.mxu0
        %v1049 = vadd.f32 %v968, %v1048
        %v1050 = vpop.f32.mrf.mxu0
        %1051 = vdwg.mxu0
        %s1052 = scalar_lea.vmem [#allocation11], 128
        %v1053 = vld [vmem:[%s1052] sm:$0xff]
        %v1054 = vld [vmem:[%s1052 + $0x8] sm:$0xff]
        %v1055 = vld [vmem:[%s1052 + $0x10] sm:$0xff]
        %v1056 = vld [vmem:[%s1052 + $0x18] sm:$0xff]
        %v1057 = vld [vmem:[%s1052 + $0x20] sm:$0xff]
        %v1058 = vld [vmem:[%s1052 + $0x28] sm:$0xff]
        %v1059 = vld [vmem:[%s1052 + $0x30] sm:$0xff]
        %v1060 = vld [vmem:[%s1052 + $0x38] sm:$0xff]
        %v1062 = vsel %vm586, %v871, 0
        %v1065 = vsel %vm586, %v872, 0
        %1067 = vmatprep.subr.mxu0 0.0
        %1068 = vmatpush1.msra.mxu0 0.0
        %1069 = vmatprep.subr.mxu0 0.0
        %1070 = vmatpush1.msra.mxu0 0.0
        %1071 = vmatprep.subr.mxu0 0.0
        %1072 = vmatpush1.msra.mxu0 0.0
        %1073 = vmatprep.subr.mxu0 0.0
        %1074 = vmatpush1.msra.mxu0 0.0
        %1075 = vmatprep.subr.mxu0 0.0
        %1076 = vmatpush1.msra.mxu0 0.0
        %1077 = vmatprep.subr.mxu0 0.0
        %1078 = vmatpush1.msra.mxu0 0.0
        %1079 = vmatprep.subr.mxu0 0.0
        %1080 = vmatpush1.msra.mxu0 0.0
        %1081 = vmatprep.subr.mxu0 0.0
        %1082 = vmatpush1.msra.mxu0 0.0
        %1083 = vmatprep.subr.mxu0 0.0
        %1084 = vmatpush1.msra.mxu0 %v1060
        %1085 = vmatprep.subr.mxu0 0.0
        %1086 = vmatpush1.msra.mxu0 %v1059
        %1087 = vmatprep.subr.mxu0 0.0
        %1088 = vmatpush1.msra.mxu0 %v1058
        %1089 = vmatprep.subr.mxu0 0.0
        %1090 = vmatpush1.msra.mxu0 %v1057
        %1091 = vmatprep.subr.mxu0 0.0
        %1092 = vmatpush1.msra.mxu0 %v1056
        %1093 = vmatprep.subr.mxu0 0.0
        %1094 = vmatpush1.msra.mxu0 %v1055
        %1095 = vmatprep.subr.mxu0 0.0
        %1096 = vmatpush1.msra.mxu0 %v1054
        %1097 = vmatprep.subr.mxu0 0.0
        %1098 = vmatpush1.msra.mxu0 %v1053
        %1099 = vmatprep.subr.mxu0 0.0
        %1100 = vmatpush2.msra.mxu0 0.0
        %1101 = vmatprep.subr.mxu0 0.0
        %1102 = vmatpush2.msra.mxu0 0.0
        %1103 = vmatprep.subr.mxu0 0.0
        %1104 = vmatpush2.msra.mxu0 0.0
        %1105 = vmatprep.subr.mxu0 0.0
        %1106 = vmatpush2.msra.mxu0 0.0
        %1107 = vmatprep.subr.mxu0 0.0
        %1108 = vmatpush2.msra.mxu0 0.0
        %1109 = vmatprep.subr.mxu0 0.0
        %1110 = vmatpush2.msra.mxu0 0.0
        %1111 = vmatprep.subr.mxu0 0.0
        %1112 = vmatpush2.msra.mxu0 0.0
        %1113 = vmatprep.subr.mxu0 0.0
        %1114 = vmatpush2.msra.mxu0 0.0
        %1115 = vmatprep.subr.mxu0 0.0
        %1116 = vmatpush2.msra.mxu0 0.0
        %1117 = vmatprep.subr.mxu0 0.0
        %1118 = vmatpush2.msra.mxu0 0.0
        %1119 = vmatprep.subr.mxu0 0.0
        %1120 = vmatpush2.msra.mxu0 0.0
        %1121 = vmatprep.subr.mxu0 0.0
        %1122 = vmatpush2.msra.mxu0 0.0
        %1123 = vmatprep.subr.mxu0 0.0
        %1124 = vmatpush2.msra.mxu0 0.0
        %1125 = vmatprep.subr.mxu0 0.0
        %1126 = vmatpush2.msra.mxu0 0.0
        %1127 = vmatprep.subr.mxu0 0.0
        %1128 = vmatpush2.msra.mxu0 0.0
        %1129 = vmatprep.subr.mxu0 0.0
        %1130 = vmatpush2.msra.mxu0 0.0
        %1131 = vmatprep.mubr.f32.mxu0 0.0
        %1132 = vmatmul.mubr.f32.gmra.mxu0 %v1062
        %v1133 = vpop.f32.mrf.mxu0
        %v1134 = vadd.f32 0.0, %v1133
        %v1135 = vpop.f32.mrf.mxu0
        %1136 = vmatprep.mubr.f32.mxu0 0.0
        %1137 = vmatmul.mubr.f32.gmra.mxu0 %v1065
        %v1138 = vpop.f32.mrf.mxu0
        %v1139 = vadd.f32 0.0, %v1138
        %v1140 = vpop.f32.mrf.mxu0
        %1141 = vdwg.mxu0
        %v1142 = vadd.f32 %v1044, %v1134
        %v1143 = vadd.f32 %v1049, %v1139
        %v1144 = vld [vmem:[%s9] sm:$0x1]
        %v1146 = vlaneseq
        %v1147 = vshrl.u32 %v1146, 7
        %v1148 = vsub.s32 0, %v1147
        %v1149 = vrot.slane %v1144, %v1148
        %v1151 = vadd.f32 %v1142, %v1149
        %v1152 = vadd.f32 %v1143, %v1149
        %v1153 = vxor.u32 %v1151, 2147483648
        %v1154 = vxor.u32 %v1152, 2147483648
        %v1155 = vmul.f32 %v1153, 1.442695
        %v1156 = vpow.pop %v1155
        %v1157 = vmul.f32 %v1154, 1.442695
        %v1158 = vpow.pop %v1157
        %v1159 = vadd.f32 %v1156, 1.0
        %v1160 = vadd.f32 %v1158, 1.0
        %v1161 = vrcp.pop %v1159
        %v1162 = vmul.f32 1.0, %v1161
        %v1163 = vrcp.pop %v1160
        %v1164 = vmul.f32 1.0, %v1163
        %v1165 = vtanh.pop %v1151
        %v1166 = vtanh.pop %v1152
        %1169 = vrot.lane.b32.xlu0 %v1165, 64
        %v1170 = vpop.permute.xlu0 %1169
        %1171 = vrot.lane.b32.xlu0 %v1166, 64
        %v1172 = vpop.permute.xlu0 %1171
        %v1175 = vmul.f32 %v1162, %v1170
        %v1176 = vmul.f32 %v1164, %v1172
        %v1177 = vld [vmem:[#allocation13] sm:$0xff]
        %v1178 = vld [vmem:[#allocation13 + $0x8] sm:$0xff]
        %v1179 = vld [vmem:[#allocation13 + $0x10] sm:$0xff]
        %v1180 = vld [vmem:[#allocation13 + $0x18] sm:$0xff]
        %v1181 = vld [vmem:[#allocation13 + $0x20] sm:$0xff]
        %v1182 = vld [vmem:[#allocation13 + $0x28] sm:$0xff]
        %v1183 = vld [vmem:[#allocation13 + $0x30] sm:$0xff]
        %v1184 = vld [vmem:[#allocation13 + $0x38] sm:$0xff]
        %v1185 = vld [vmem:[%s11] sm:$0x1]
        %v1187 = vlaneseq
        %v1188 = vshrl.u32 %v1187, 7
        %v1189 = vsub.s32 0, %v1188
        %v1190 = vrot.slane %v1185, %v1189
        %v1193 = vsel %vm586, %v1175, 0
        %v1196 = vsel %vm586, %v1176, 0
        %1198 = vmatprep.subr.mxu0 0.0
        %1199 = vmatpush1.msra.mxu0 0.0
        %1200 = vmatprep.subr.mxu0 0.0
        %1201 = vmatpush1.msra.mxu0 0.0
        %1202 = vmatprep.subr.mxu0 0.0
        %1203 = vmatpush1.msra.mxu0 0.0
        %1204 = vmatprep.subr.mxu0 0.0
        %1205 = vmatpush1.msra.mxu0 0.0
        %1206 = vmatprep.subr.mxu0 0.0
        %1207 = vmatpush1.msra.mxu0 0.0
        %1208 = vmatprep.subr.mxu0 0.0
        %1209 = vmatpush1.msra.mxu0 0.0
        %1210 = vmatprep.subr.mxu0 0.0
        %1211 = vmatpush1.msra.mxu0 0.0
        %1212 = vmatprep.subr.mxu0 0.0
        %1213 = vmatpush1.msra.mxu0 0.0
        %1214 = vmatprep.subr.mxu0 0.0
        %1215 = vmatpush1.msra.mxu0 %v1184
        %1216 = vmatprep.subr.mxu0 0.0
        %1217 = vmatpush1.msra.mxu0 %v1183
        %1218 = vmatprep.subr.mxu0 0.0
        %1219 = vmatpush1.msra.mxu0 %v1182
        %1220 = vmatprep.subr.mxu0 0.0
        %1221 = vmatpush1.msra.mxu0 %v1181
        %1222 = vmatprep.subr.mxu0 0.0
        %1223 = vmatpush1.msra.mxu0 %v1180
        %1224 = vmatprep.subr.mxu0 0.0
        %1225 = vmatpush1.msra.mxu0 %v1179
        %1226 = vmatprep.subr.mxu0 0.0
        %1227 = vmatpush1.msra.mxu0 %v1178
        %1228 = vmatprep.subr.mxu0 0.0
        %1229 = vmatpush1.msra.mxu0 %v1177
        %1230 = vmatprep.subr.mxu0 0.0
        %1231 = vmatpush2.msra.mxu0 0.0
        %1232 = vmatprep.subr.mxu0 0.0
        %1233 = vmatpush2.msra.mxu0 0.0
        %1234 = vmatprep.subr.mxu0 0.0
        %1235 = vmatpush2.msra.mxu0 0.0
        %1236 = vmatprep.subr.mxu0 0.0
        %1237 = vmatpush2.msra.mxu0 0.0
        %1238 = vmatprep.subr.mxu0 0.0
        %1239 = vmatpush2.msra.mxu0 0.0
        %1240 = vmatprep.subr.mxu0 0.0
        %1241 = vmatpush2.msra.mxu0 0.0
        %1242 = vmatprep.subr.mxu0 0.0
        %1243 = vmatpush2.msra.mxu0 0.0
        %1244 = vmatprep.subr.mxu0 0.0
        %1245 = vmatpush2.msra.mxu0 0.0
        %1246 = vmatprep.subr.mxu0 0.0
        %1247 = vmatpush2.msra.mxu0 0.0
        %1248 = vmatprep.subr.mxu0 0.0
        %1249 = vmatpush2.msra.mxu0 0.0
        %1250 = vmatprep.subr.mxu0 0.0
        %1251 = vmatpush2.msra.mxu0 0.0
        %1252 = vmatprep.subr.mxu0 0.0
        %1253 = vmatpush2.msra.mxu0 0.0
        %1254 = vmatprep.subr.mxu0 0.0
        %1255 = vmatpush2.msra.mxu0 0.0
        %1256 = vmatprep.subr.mxu0 0.0
        %1257 = vmatpush2.msra.mxu0 0.0
        %1258 = vmatprep.subr.mxu0 0.0
        %1259 = vmatpush2.msra.mxu0 0.0
        %1260 = vmatprep.subr.mxu0 0.0
        %1261 = vmatpush2.msra.mxu0 0.0
        %1262 = vmatprep.mubr.f32.mxu0 0.0
        %1263 = vmatmul.mubr.f32.gmra.mxu0 %v1193
        %v1264 = vpop.f32.mrf.mxu0
        %v1265 = vadd.f32 %v1190, %v1264
        %v1266 = vpop.f32.mrf.mxu0
        %1267 = vmatprep.mubr.f32.mxu0 0.0
        %1268 = vmatmul.mubr.f32.gmra.mxu0 %v1196
        %v1269 = vpop.f32.mrf.mxu0
        %v1270 = vadd.f32 %v1190, %v1269
        %v1271 = vpop.f32.mrf.mxu0
        %1272 = vdwg.mxu0
        %v1273 = vadd.f32 %v1265, %v834
        %v1274 = vadd.f32 %v1270, %v835
        %v1275 = vmul.f32 %v1273, 0.70710677
        %v1276 = vmul.f32 %v1274, 0.70710677
        %1277 = vst.msk [vmem:[%s565] sm:$0xff] %vm586, %v1275
        %1278 = vst.msk [vmem:[%s565 + $0x8] sm:$0xff] %vm586, %v1276
        %vm1279 = vcmask 1048064
        %1280 = vst.msk [vmem:[%s565] sm:$0xff] %vm1279, %v1265
        %1281 = vst.msk [vmem:[%s565 + $0x8] sm:$0xff] %vm1279, %v1270
        %s1282 = sand.u32 %s314, 1
        %s1283 = scalar_lea.sflag [#allocation4], %s1282
        %s1284 = sand.u32 %s314, 1
        %s1285 = smul.addr %s1284, 16
        %s1286 = scalar_lea.vmem [#allocation14], %s1285
        // Predicated region
        $region97: #{tpu_custom_call.1} parent=67 // pred_check
          %p1287 = pneg %p324
        $region98: #{tpu_custom_call.1} parent=67 // pred_check_branch
          %1289 = sbr.rel (%p1287) target = $region100
        $region99: #{tpu_custom_call.1} parent=67 // pred_region
          %s1291 = ssub.s32 256, 256
          %1292 = vsyncadd %s1283, %s1291
          %s1293 = smul.addr %s34, 2
          %s1294 = smul.addr %s1293, 128
          %s1295 = scalar_lea.hbm %s12, %s1294
          %s1296 = sshll.u32 %s1286, 4
          %s1297 = int_to_ptr.vmem [resolvable:$true] %s1296
          %1302 = dma.vmem_to_hbm [thread:$0]  %s1297, 256, %s1295, %s1283, 128, 128, 8
        $region100: #{tpu_custom_call.1} parent=67 // pred_fallthru
          _
      $region68: #{tpu_custom_call.1} parent=5 // pred_fallthru
        _
      %p1303 = scmp.le.s32.totalorder 2, %s29
      // Predicated region
      $region101: #{tpu_custom_call.1} parent=5 // pred_check
        %p1304 = pneg %p1303
      $region102: #{tpu_custom_call.1} parent=5 // pred_check_branch
        %1306 = sbr.rel (%p1304) target = $region104
      $region103: #{tpu_custom_call.1} parent=5 // pred_region
        %s1307 = ssub.s32 %s29, 2
        // Predicated region
        $region105: #{tpu_custom_call.1} parent=103 // pred_check
          %p1308 = pneg %p330
        $region106: #{tpu_custom_call.1} parent=103 // pred_check_branch
          %1310 = sbr.rel (%p1308) target = $region108
        $region107: #{tpu_custom_call.1} parent=103 // pred_region
          %s1311 = sand.u32 %s315, 1
          %s1312 = scalar_lea.sflag [#allocation4], %s1311
          %s1313 = sand.u32 %s315, 1
          %s1314 = smul.addr %s1313, 16
          %s1315 = scalar_lea.vmem [#allocation14], %s1314
          %1316 = dma.done %s1312, 256
        $region108: #{tpu_custom_call.1} parent=103 // pred_fallthru
          _
      $region104: #{tpu_custom_call.1} parent=5 // pred_fallthru
        _
    $region6: #{tpu_custom_call.1} parent=1 // loop_footer
      %s33 = sadd.s32 1, %s29
    $region7: #{tpu_custom_call.1} parent=1 // loop_footer_branch
      %28 = sbr.rel target = $region3
    $region8: #{tpu_custom_call.1} parent=1 // loop_exit
      _
    %1317 = vsyncpa [#allocation3], 1
    %s1318 = scalar_lea.sflag [#allocation3], 1
    %1319 = vsyncpa %s1318, 1
    %1320 = vsyncpa [#allocation6], 1
    %s1321 = scalar_lea.sflag [#allocation6], 1
    %1322 = vsyncpa %s1321, 1
    %1323 = vsyncpa [#allocation9], 1
    %1324 = vsyncpa [#allocation12], 1
    %1325 = vsyncpa [#allocation4], 1
    %s1326 = scalar_lea.sflag [#allocation4], 1
    %1327 = vsyncpa %s1326, 1

</llo_original>
